<compile_context>
chip_gen: v7x
topology: tpu7x:2x2x1
jax: 0.10.0
libtpu: 0.0.40
codegen_flags: <defaults>
</compile_context>

<pallas_src>
import functools
import math

import jax
import jax.numpy as jnp
from jax.experimental import pallas as pl
from jax.experimental.pallas import tpu as pltpu

INV_SQRT_2 = 1.0 / math.sqrt(2.0)
LANE = 128
SUBLANE = 8


def _round_up(n, m):
    return ((n + m - 1) // m) * m


def _fused_mlp_kernel(*refs, n_layers, matmul_dtype):
    """refs = (x_ref, w0, b0, w1, b1, ..., w_{L-1}, b_{L-1}, o_ref).

    Entire MLP in one kernel body: matmuls hit the MXU (f32 accumulate),
    the exact erf-GELU runs on the VPU in f32, and layer intermediates stay
    as values (a few vregs) -- no HBM writeback between layers.
    """
    x_ref = refs[0]
    o_ref = refs[-1]
    wb = refs[1:-1]

    a = x_ref[...]
    for i in range(n_layers):
        w = wb[2 * i][...]
        b = wb[2 * i + 1][...]
        if matmul_dtype is not None:
            # MXU-native operands (bf16 on v6e/v7x); accumulation stays f32.
            lhs = a.astype(matmul_dtype)
            rhs = w.astype(matmul_dtype)
        else:
            lhs, rhs = a, w
        a = jnp.dot(lhs, rhs, preferred_element_type=jnp.float32) + b
        if i != n_layers - 1:
            # nn.GELU() default = exact erf formulation (f32 elementwise).
            a = 0.5 * a * (1.0 + jax.lax.erf(a * INV_SQRT_2))
    o_ref[...] = a.astype(o_ref.dtype)


def _pick_block_batch(B):
    """Batch tile heuristic:
      * cap at 512 rows (f32 activation block is small; amortizes the ~0.35 us
        per-grid-step overhead and feeds the 256-row MXU on v6e/v7x),
      * >= 2 grid steps whenever B allows, so dimension_semantics=("parallel",)
        can shard across the two v7x TensorCores,
      * multiples of 8 (sublane) so block shapes satisfy the (8, 128) rule.
    """
    cap = 512
    if B <= SUBLANE:
        return B  # single full-extent tile; too small to split usefully
    half = _round_up((B + 1) // 2, SUBLANE)
    return min(cap, half)


def fused_mlp(x, padded_params, out_dim, *, block_batch=None,
              matmul_dtype=None, single_buffer_weights=True):
    """x: (B, Din); padded_params: [(W_i, b_i)] with lane-padded feature dims.

    Returns (B, out_dim). Weights are whole and VMEM-resident (index_map
    (0, 0), single-buffered); the batch axis is the only grid axis.
    """
    B, Din = x.shape
    n_layers = len(padded_params)
    dout_pad = padded_params[-1][0].shape[1]

    if block_batch is None:
        block_batch = _pick_block_batch(B)

    # Handle non-multiple batch sizes by zero-padding (rows discarded below).
    B_pad = _round_up(B, block_batch)
    if B_pad != B:
        x = jnp.pad(x, ((0, B_pad - B), (0, 0)))
    grid = (B_pad // block_batch,)

    # Constant-index weights/biases: nothing to prefetch, so single-buffer them
    # (halves their VMEM footprint vs. the default double-buffering).
    weight_mode = dict(pipeline_mode=pl.Buffered(1)) if single_buffer_weights else {}

    in_specs = [pl.BlockSpec((block_batch, Din), lambda i: (i, 0))]
    flat_wb = []
    for w, b in padded_params:
        din_i, dout_i = w.shape
        in_specs.append(pl.BlockSpec((din_i, dout_i), lambda i: (0, 0), **weight_mode))
        in_specs.append(pl.BlockSpec((1, dout_i), lambda i: (0, 0), **weight_mode))
        flat_wb += [w, b]

    # Explicit VMEM budget: resident weights (+biases) x buffer count, plus
    # double-buffered activation in/out blocks, with 2x slack.
    itemsize = jnp.dtype(x.dtype).itemsize
    wbufs = 1 if single_buffer_weights else 2
    est = wbufs * sum(w.size * jnp.dtype(w.dtype).itemsize
                      + b.size * jnp.dtype(b.dtype).itemsize
                      for w, b in padded_params)
    est += 2 * block_batch * Din * itemsize
    est += 2 * block_batch * dout_pad * itemsize
    vmem_limit = int(min(48 << 20, max(8 << 20, 2 * est)))

    out_padded = pl.pallas_call(
        functools.partial(_fused_mlp_kernel, n_layers=n_layers,
                          matmul_dtype=matmul_dtype),
        out_shape=jax.ShapeDtypeStruct((B_pad, dout_pad), x.dtype),
        grid=grid,
        in_specs=in_specs,
        out_specs=pl.BlockSpec((block_batch, dout_pad), lambda i: (i, 0)),
        compiler_params=pltpu.CompilerParams(
            # Batch axis is embarrassingly parallel -> shards across the two
            # TensorCores on v7x; harmless on v5e/v6e (single TC).
            dimension_semantics=("parallel",),
            vmem_limit_bytes=vmem_limit,
        ),
    )(x, *flat_wb)

    # In-kernel store stays lane-dense (128-wide); this slice fuses into the
    # surrounding jit (it is never a standalone kernel launch here).
    return out_padded[:B, :out_dim]


def init_params(layers, key):
    """Xavier-normal weights (gain=1.0), zero biases -- matches nn.init in Net."""
    params = []
    for i in range(len(layers) - 1):
        fan_in, fan_out = layers[i], layers[i + 1]
        key, sub = jax.random.split(key)
        std = math.sqrt(2.0 / (fan_in + fan_out))
        # Stored pre-transposed: (in_features, out_features).
        w = jax.random.normal(sub, (fan_in, fan_out), dtype=jnp.float32) * std
        b = jnp.zeros((1, fan_out), dtype=jnp.float32)
        params.append((w, b))
    return params


def pad_params_lane_dense(params):
    """Zero-pad every layer's out-feature dim (and the matching next-layer
    in-feature dim) up to a multiple of 128 lanes.

    Exactness: padded weight rows/cols and bias lanes are 0, and GELU(0)=0,
    so padded lanes stay exactly 0 through every layer; slicing the final
    output recovers the unpadded result bit-for-bit.
    """
    padded = []
    prev_in = params[0][0].shape[0]  # keep original Din (full-dim block is legal)
    for (w, b) in params:
        din, dout = w.shape
        dout_p = _round_up(dout, LANE)
        w_p = jnp.zeros((prev_in, dout_p), w.dtype).at[:din, :dout].set(w)
        b_p = jnp.zeros((1, dout_p), b.dtype).at[:, :dout].set(b)
        padded.append((w_p, b_p))
        prev_in = dout_p
    return padded


def net_forward(padded_params, x, out_dim, *, matmul_dtype=None,
                single_buffer_weights=True):
    """Reproduces Net.forward: GELU after every linear except the last,
    all inside a single fused Pallas kernel."""
    return fused_mlp(x, padded_params, out_dim,
                     matmul_dtype=matmul_dtype,
                     single_buffer_weights=single_buffer_weights)


if __name__ == "__main__":
    layers = [16, 32, 32, 8]   # MLP widths, as in Net(layers)
    batch = 32                 # small, but enough for >=2 grid steps (16-row tiles)

    key = jax.random.PRNGKey(0)
    key, pkey, xkey = jax.random.split(key, 3)

    params = init_params(layers, pkey)              # unpadded (reference) params
    padded_params = pad_params_lane_dense(params)   # lane-dense kernel params (one-time)
    x = jax.random.normal(xkey, (batch, layers[0]), dtype=jnp.float32)

    # Default path: f32 matmuls (bit-matches fp32 PyTorch), single-buffered weights.
    # For v6e/v7x throughput at real widths, pass matmul_dtype=jnp.bfloat16.
    fwd = jax.jit(functools.partial(net_forward, out_dim=layers[-1]))
    try:
        out = jax.block_until_ready(fwd(padded_params, x))
    except Exception:
        # Fallback if this JAX build rejects Buffered(1) weight specs.
        fwd = jax.jit(functools.partial(net_forward, out_dim=layers[-1],
                                        single_buffer_weights=False))
        out = jax.block_until_ready(fwd(padded_params, x))

    # Sanity: pure-JAX reference of the same math on the *unpadded* params.
    def ref(ps, xv):
        a = xv
        for i, (w, b) in enumerate(ps):
            a = a @ w + b
            if i != len(ps) - 1:
                a = 0.5 * a * (1.0 + jax.lax.erf(a * INV_SQRT_2))
        return a

    r = ref(params, x)
    assert out.shape == (batch, layers[-1])
    assert jnp.allclose(out, r, atol=1e-5, rtol=1e-5)

    print("KERNEL_OK")
</pallas_src>

<mosaic_0001>
module attributes {stable_mosaic.version = 11 : i64} {
  func.func @_fused_mlp_kernel(%arg0: i32, %arg1: memref<16x16xf32, #tpu.memory_space<vmem>>, %arg2: memref<16x128xf32, #tpu.memory_space<vmem>>, %arg3: memref<1x128xf32, #tpu.memory_space<vmem>>, %arg4: memref<128x128xf32, #tpu.memory_space<vmem>>, %arg5: memref<1x128xf32, #tpu.memory_space<vmem>>, %arg6: memref<128x128xf32, #tpu.memory_space<vmem>>, %arg7: memref<1x128xf32, #tpu.memory_space<vmem>>, %arg8: memref<16x128xf32, #tpu.memory_space<vmem>>) attributes {dimension_semantics = [#tpu.dimension_semantics<parallel>], iteration_bounds = array<i64: 2>, scalar_prefetch = 0 : i64, scratch_operands = 0 : i64, tpu.core_type = #tpu.core_type<tc>, window_params = [{transform_indices = @transform_0, window_bounds = array<i64: 16, 16>}, {pipeline_mode = #tpu.pipeline_mode<synchronous>, transform_indices = @transform_1, window_bounds = array<i64: 16, 128>}, {pipeline_mode = #tpu.pipeline_mode<synchronous>, transform_indices = @transform_2, window_bounds = array<i64: 1, 128>}, {pipeline_mode = #tpu.pipeline_mode<synchronous>, transform_indices = @transform_3, window_bounds = array<i64: 128, 128>}, {pipeline_mode = #tpu.pipeline_mode<synchronous>, transform_indices = @transform_4, window_bounds = array<i64: 1, 128>}, {pipeline_mode = #tpu.pipeline_mode<synchronous>, transform_indices = @transform_5, window_bounds = array<i64: 128, 128>}, {pipeline_mode = #tpu.pipeline_mode<synchronous>, transform_indices = @transform_6, window_bounds = array<i64: 1, 128>}, {transform_indices = @transform_7, window_bounds = array<i64: 16, 128>}]} {
    %c0 = arith.constant 0 : index
    %c0_0 = arith.constant 0 : index
    %0 = vector.load %arg1[%c0, %c0_0] : memref<16x16xf32, #tpu.memory_space<vmem>>, vector<16x16xf32>
    %c0_1 = arith.constant 0 : index
    %c0_2 = arith.constant 0 : index
    %1 = vector.load %arg2[%c0_1, %c0_2] : memref<16x128xf32, #tpu.memory_space<vmem>>, vector<16x128xf32>
    %c0_3 = arith.constant 0 : index
    %c0_4 = arith.constant 0 : index
    %2 = vector.load %arg3[%c0_3, %c0_4] : memref<1x128xf32, #tpu.memory_space<vmem>>, vector<1x128xf32>
    %cst = arith.constant dense<0.000000e+00> : vector<16x128xf32>
    %3 = tpu.matmul %0, %1, %cst {dimension_numbers = #tpu.dot_dimension_numbers<[1], [0], [0], [1], [0, 0, 1, 1], [], []>} : vector<16x16xf32>, vector<16x128xf32>, vector<16x128xf32> -> vector<16x128xf32>
    %4 = vector.broadcast %2 : vector<1x128xf32> to vector<16x128xf32>
    %5 = arith.addf %3, %4 : vector<16x128xf32>
    %cst_5 = arith.constant 5.000000e-01 : f32
    %6 = vector.broadcast %cst_5 : f32 to vector<16x128xf32>
    %7 = arith.mulf %6, %5 : vector<16x128xf32>
    %cst_6 = arith.constant 0.707106769 : f32
    %8 = vector.broadcast %cst_6 : f32 to vector<16x128xf32>
    %9 = arith.mulf %5, %8 : vector<16x128xf32>
    %10 = math.erf %9 : vector<16x128xf32>
    %cst_7 = arith.constant 1.000000e+00 : f32
    %11 = vector.broadcast %cst_7 : f32 to vector<16x128xf32>
    %12 = arith.addf %11, %10 : vector<16x128xf32>
    %13 = arith.mulf %7, %12 : vector<16x128xf32>
    %c0_8 = arith.constant 0 : index
    %c0_9 = arith.constant 0 : index
    %14 = vector.load %arg4[%c0_8, %c0_9] : memref<128x128xf32, #tpu.memory_space<vmem>>, vector<128x128xf32>
    %c0_10 = arith.constant 0 : index
    %c0_11 = arith.constant 0 : index
    %15 = vector.load %arg5[%c0_10, %c0_11] : memref<1x128xf32, #tpu.memory_space<vmem>>, vector<1x128xf32>
    %cst_12 = arith.constant dense<0.000000e+00> : vector<16x128xf32>
    %16 = tpu.matmul %13, %14, %cst_12 {dimension_numbers = #tpu.dot_dimension_numbers<[1], [0], [0], [1], [0, 0, 1, 1], [], []>} : vector<16x128xf32>, vector<128x128xf32>, vector<16x128xf32> -> vector<16x128xf32>
    %17 = vector.broadcast %15 : vector<1x128xf32> to vector<16x128xf32>
    %18 = arith.addf %16, %17 : vector<16x128xf32>
    %cst_13 = arith.constant 5.000000e-01 : f32
    %19 = vector.broadcast %cst_13 : f32 to vector<16x128xf32>
    %20 = arith.mulf %19, %18 : vector<16x128xf32>
    %cst_14 = arith.constant 0.707106769 : f32
    %21 = vector.broadcast %cst_14 : f32 to vector<16x128xf32>
    %22 = arith.mulf %18, %21 : vector<16x128xf32>
    %23 = math.erf %22 : vector<16x128xf32>
    %cst_15 = arith.constant 1.000000e+00 : f32
    %24 = vector.broadcast %cst_15 : f32 to vector<16x128xf32>
    %25 = arith.addf %24, %23 : vector<16x128xf32>
    %26 = arith.mulf %20, %25 : vector<16x128xf32>
    %c0_16 = arith.constant 0 : index
    %c0_17 = arith.constant 0 : index
    %27 = vector.load %arg6[%c0_16, %c0_17] : memref<128x128xf32, #tpu.memory_space<vmem>>, vector<128x128xf32>
    %c0_18 = arith.constant 0 : index
    %c0_19 = arith.constant 0 : index
    %28 = vector.load %arg7[%c0_18, %c0_19] : memref<1x128xf32, #tpu.memory_space<vmem>>, vector<1x128xf32>
    %cst_20 = arith.constant dense<0.000000e+00> : vector<16x128xf32>
    %29 = tpu.matmul %26, %27, %cst_20 {dimension_numbers = #tpu.dot_dimension_numbers<[1], [0], [0], [1], [0, 0, 1, 1], [], []>} : vector<16x128xf32>, vector<128x128xf32>, vector<16x128xf32> -> vector<16x128xf32>
    %30 = vector.broadcast %28 : vector<1x128xf32> to vector<16x128xf32>
    %31 = arith.addf %29, %30 : vector<16x128xf32>
    %c0_21 = arith.constant 0 : index
    %c0_22 = arith.constant 0 : index
    %32 = vector.load %arg8[%c0_21, %c0_22] : memref<16x128xf32, #tpu.memory_space<vmem>>, vector<16x128xf32>
    tpu.vector_store %arg8[%c0_21, %c0_22], %31 {strides = array<i32>} : memref<16x128xf32, #tpu.memory_space<vmem>>, vector<16x128xf32>,
    return
  }
  func.func @transform_0(%arg0: i32) -> (i32, i32) {
    %c0_i32 = arith.constant 0 : i32
    %c0_i32_0 = arith.constant 0 : i32
    return %arg0, %c0_i32 : i32, i32
  }
  func.func @transform_1(%arg0: i32) -> (i32, i32) {
    %c0_i32 = arith.constant 0 : i32
    %c0_i32_0 = arith.constant 0 : i32
    %c0_i32_1 = arith.constant 0 : i32
    return %c0_i32, %c0_i32_0 : i32, i32
  }
  func.func @transform_2(%arg0: i32) -> (i32, i32) {
    %c0_i32 = arith.constant 0 : i32
    %c0_i32_0 = arith.constant 0 : i32
    %c0_i32_1 = arith.constant 0 : i32
    return %c0_i32, %c0_i32_0 : i32, i32
  }
  func.func @transform_3(%arg0: i32) -> (i32, i32) {
    %c0_i32 = arith.constant 0 : i32
    %c0_i32_0 = arith.constant 0 : i32
    %c0_i32_1 = arith.constant 0 : i32
    return %c0_i32, %c0_i32_0 : i32, i32
  }
  func.func @transform_4(%arg0: i32) -> (i32, i32) {
    %c0_i32 = arith.constant 0 : i32
    %c0_i32_0 = arith.constant 0 : i32
    %c0_i32_1 = arith.constant 0 : i32
    return %c0_i32, %c0_i32_0 : i32, i32
  }
  func.func @transform_5(%arg0: i32) -> (i32, i32) {
    %c0_i32 = arith.constant 0 : i32
    %c0_i32_0 = arith.constant 0 : i32
    %c0_i32_1 = arith.constant 0 : i32
    return %c0_i32, %c0_i32_0 : i32, i32
  }
  func.func @transform_6(%arg0: i32) -> (i32, i32) {
    %c0_i32 = arith.constant 0 : i32
    %c0_i32_0 = arith.constant 0 : i32
    %c0_i32_1 = arith.constant 0 : i32
    return %c0_i32, %c0_i32_0 : i32, i32
  }
  func.func @transform_7(%arg0: i32) -> (i32, i32) {
    %c0_i32 = arith.constant 0 : i32
    %c0_i32_0 = arith.constant 0 : i32
    return %arg0, %c0_i32 : i32, i32
  }
}

module attributes {stable_mosaic.version = 11 : i64} {
  func.func @_fused_mlp_kernel(%arg0: i32, %arg1: memref<16x16xf32, #tpu.memory_space<vmem>>, %arg2: memref<16x128xf32, #tpu.memory_space<vmem>>, %arg3: memref<1x128xf32, #tpu.memory_space<vmem>>, %arg4: memref<128x128xf32, #tpu.memory_space<vmem>>, %arg5: memref<1x128xf32, #tpu.memory_space<vmem>>, %arg6: memref<128x128xf32, #tpu.memory_space<vmem>>, %arg7: memref<1x128xf32, #tpu.memory_space<vmem>>, %arg8: memref<16x128xf32, #tpu.memory_space<vmem>>) attributes {dimension_semantics = [#tpu.dimension_semantics<parallel>], iteration_bounds = array<i64: 2>, scalar_prefetch = 0 : i64, scratch_operands = 0 : i64, tpu.core_type = #tpu.core_type<tc>, window_params = [{transform_indices = @transform_0, window_bounds = array<i64: 16, 16>}, {pipeline_mode = #tpu.pipeline_mode<synchronous>, transform_indices = @transform_1, window_bounds = array<i64: 16, 128>}, {pipeline_mode = #tpu.pipeline_mode<synchronous>, transform_indices = @transform_2, window_bounds = array<i64: 1, 128>}, {pipeline_mode = #tpu.pipeline_mode<synchronous>, transform_indices = @transform_3, window_bounds = array<i64: 128, 128>}, {pipeline_mode = #tpu.pipeline_mode<synchronous>, transform_indices = @transform_4, window_bounds = array<i64: 1, 128>}, {pipeline_mode = #tpu.pipeline_mode<synchronous>, transform_indices = @transform_5, window_bounds = array<i64: 128, 128>}, {pipeline_mode = #tpu.pipeline_mode<synchronous>, transform_indices = @transform_6, window_bounds = array<i64: 1, 128>}, {transform_indices = @transform_7, window_bounds = array<i64: 16, 128>}]} {
    %c0 = arith.constant 0 : index
    %c0_0 = arith.constant 0 : index
    %0 = vector.load %arg1[%c0, %c0_0] : memref<16x16xf32, #tpu.memory_space<vmem>>, vector<16x16xf32>
    %c0_1 = arith.constant 0 : index
    %c0_2 = arith.constant 0 : index
    %1 = vector.load %arg2[%c0_1, %c0_2] : memref<16x128xf32, #tpu.memory_space<vmem>>, vector<16x128xf32>
    %c0_3 = arith.constant 0 : index
    %c0_4 = arith.constant 0 : index
    %2 = vector.load %arg3[%c0_3, %c0_4] : memref<1x128xf32, #tpu.memory_space<vmem>>, vector<1x128xf32>
    %cst = arith.constant dense<0.000000e+00> : vector<16x128xf32>
    %3 = tpu.matmul %0, %1, %cst {dimension_numbers = #tpu.dot_dimension_numbers<[1], [0], [0], [1], [0, 0, 1, 1], [], []>} : vector<16x16xf32>, vector<16x128xf32>, vector<16x128xf32> -> vector<16x128xf32>
    %4 = vector.broadcast %2 : vector<1x128xf32> to vector<16x128xf32>
    %5 = arith.addf %3, %4 : vector<16x128xf32>
    %cst_5 = arith.constant 5.000000e-01 : f32
    %6 = vector.broadcast %cst_5 : f32 to vector<16x128xf32>
    %7 = arith.mulf %6, %5 : vector<16x128xf32>
    %cst_6 = arith.constant 0.707106769 : f32
    %8 = vector.broadcast %cst_6 : f32 to vector<16x128xf32>
    %9 = arith.mulf %5, %8 : vector<16x128xf32>
    %10 = math.erf %9 : vector<16x128xf32>
    %cst_7 = arith.constant 1.000000e+00 : f32
    %11 = vector.broadcast %cst_7 : f32 to vector<16x128xf32>
    %12 = arith.addf %11, %10 : vector<16x128xf32>
    %13 = arith.mulf %7, %12 : vector<16x128xf32>
    %c0_8 = arith.constant 0 : index
    %c0_9 = arith.constant 0 : index
    %14 = vector.load %arg4[%c0_8, %c0_9] : memref<128x128xf32, #tpu.memory_space<vmem>>, vector<128x128xf32>
    %c0_10 = arith.constant 0 : index
    %c0_11 = arith.constant 0 : index
    %15 = vector.load %arg5[%c0_10, %c0_11] : memref<1x128xf32, #tpu.memory_space<vmem>>, vector<1x128xf32>
    %cst_12 = arith.constant dense<0.000000e+00> : vector<16x128xf32>
    %16 = tpu.matmul %13, %14, %cst_12 {dimension_numbers = #tpu.dot_dimension_numbers<[1], [0], [0], [1], [0, 0, 1, 1], [], []>} : vector<16x128xf32>, vector<128x128xf32>, vector<16x128xf32> -> vector<16x128xf32>
    %17 = vector.broadcast %15 : vector<1x128xf32> to vector<16x128xf32>
    %18 = arith.addf %16, %17 : vector<16x128xf32>
    %cst_13 = arith.constant 5.000000e-01 : f32
    %19 = vector.broadcast %cst_13 : f32 to vector<16x128xf32>
    %20 = arith.mulf %19, %18 : vector<16x128xf32>
    %cst_14 = arith.constant 0.707106769 : f32
    %21 = vector.broadcast %cst_14 : f32 to vector<16x128xf32>
    %22 = arith.mulf %18, %21 : vector<16x128xf32>
    %23 = math.erf %22 : vector<16x128xf32>
    %cst_15 = arith.constant 1.000000e+00 : f32
    %24 = vector.broadcast %cst_15 : f32 to vector<16x128xf32>
    %25 = arith.addf %24, %23 : vector<16x128xf32>
    %26 = arith.mulf %20, %25 : vector<16x128xf32>
    %c0_16 = arith.constant 0 : index
    %c0_17 = arith.constant 0 : index
    %27 = vector.load %arg6[%c0_16, %c0_17] : memref<128x128xf32, #tpu.memory_space<vmem>>, vector<128x128xf32>
    %c0_18 = arith.constant 0 : index
    %c0_19 = arith.constant 0 : index
    %28 = vector.load %arg7[%c0_18, %c0_19] : memref<1x128xf32, #tpu.memory_space<vmem>>, vector<1x128xf32>
    %cst_20 = arith.constant dense<0.000000e+00> : vector<16x128xf32>
    %29 = tpu.matmul %26, %27, %cst_20 {dimension_numbers = #tpu.dot_dimension_numbers<[1], [0], [0], [1], [0, 0, 1, 1], [], []>} : vector<16x128xf32>, vector<128x128xf32>, vector<16x128xf32> -> vector<16x128xf32>
    %30 = vector.broadcast %28 : vector<1x128xf32> to vector<16x128xf32>
    %31 = arith.addf %29, %30 : vector<16x128xf32>
    %c0_21 = arith.constant 0 : index
    %c0_22 = arith.constant 0 : index
    %32 = vector.load %arg8[%c0_21, %c0_22] : memref<16x128xf32, #tpu.memory_space<vmem>>, vector<16x128xf32>
    tpu.vector_store %arg8[%c0_21, %c0_22], %31 {strides = array<i32>} : memref<16x128xf32, #tpu.memory_space<vmem>>, vector<16x128xf32>,
    return
  }
  func.func @transform_0(%arg0: i32) -> (i32, i32) {
    %c0_i32 = arith.constant 0 : i32
    %c0_i32_0 = arith.constant 0 : i32
    return %arg0, %c0_i32 : i32, i32
  }
  func.func @transform_1(%arg0: i32) -> (i32, i32) {
    %c0_i32 = arith.constant 0 : i32
    %c0_i32_0 = arith.constant 0 : i32
    %c0_i32_1 = arith.constant 0 : i32
    return %c0_i32, %c0_i32_0 : i32, i32
  }
  func.func @transform_2(%arg0: i32) -> (i32, i32) {
    %c0_i32 = arith.constant 0 : i32
    %c0_i32_0 = arith.constant 0 : i32
    %c0_i32_1 = arith.constant 0 : i32
    return %c0_i32, %c0_i32_0 : i32, i32
  }
  func.func @transform_3(%arg0: i32) -> (i32, i32) {
    %c0_i32 = arith.constant 0 : i32
    %c0_i32_0 = arith.constant 0 : i32
    %c0_i32_1 = arith.constant 0 : i32
    return %c0_i32, %c0_i32_0 : i32, i32
  }
  func.func @transform_4(%arg0: i32) -> (i32, i32) {
    %c0_i32 = arith.constant 0 : i32
    %c0_i32_0 = arith.constant 0 : i32
    %c0_i32_1 = arith.constant 0 : i32
    return %c0_i32, %c0_i32_0 : i32, i32
  }
  func.func @transform_5(%arg0: i32) -> (i32, i32) {
    %c0_i32 = arith.constant 0 : i32
    %c0_i32_0 = arith.constant 0 : i32
    %c0_i32_1 = arith.constant 0 : i32
    return %c0_i32, %c0_i32_0 : i32, i32
  }
  func.func @transform_6(%arg0: i32) -> (i32, i32) {
    %c0_i32 = arith.constant 0 : i32
    %c0_i32_0 = arith.constant 0 : i32
    %c0_i32_1 = arith.constant 0 : i32
    return %c0_i32, %c0_i32_0 : i32, i32
  }
  func.func @transform_7(%arg0: i32) -> (i32, i32) {
    %c0_i32 = arith.constant 0 : i32
    %c0_i32_0 = arith.constant 0 : i32
    return %arg0, %c0_i32 : i32, i32
  }
}

</mosaic_0001>

<llo_original>
// kernel: net_forward.1
$region0: #{net_forward.1}
  #allocation0 [shape = 'u32[]', space=smem, size = 0x4, offset = 0x4, fixed_abs, tag = 'smem constant byte address 0x4 - core index']
  #allocation1 [shape = 'u32[144,128]{1,0:T(1,128)}', space=vmem, size = 0x12000, scoped, tag = 'internal scratch']
  %s0 = inlined_call_operand.vmem [shape: f32[32,16], index: 0, kind: input, shape index: {}]
  %s1 = inlined_call_operand.vmem [shape: f32[16,128], index: 1, kind: input, shape index: {}]
  %s2 = inlined_call_operand.vmem [shape: f32[1,128], index: 2, kind: input, shape index: {}]
  %s3 = inlined_call_operand.hbm [shape: f32[128,128], index: 3, kind: input, shape index: {}]
  %s4 = inlined_call_operand.vmem [shape: f32[1,128], index: 4, kind: input, shape index: {}]
  %s5 = inlined_call_operand.hbm [shape: f32[128,128], index: 5, kind: input, shape index: {}]
  %s6 = inlined_call_operand.vmem [shape: f32[1,128], index: 6, kind: input, shape index: {}]
  %s7 = inlined_call_operand.vmem [shape: f32[32,128], index: 7, kind: output, shape index: {}]
  %s8 = sld [smem:[#allocation0]]
  $region69: #{net_forward.1} parent=0
    _
  %s10 = ssub.s32 1, %s8
  %s11 = scalar_select 0, %s10, %s8
  $region1: #{net_forward.1} parent=0
    #allocation2 [shape = 'u8[65536]{0}', space=vmem, size = 0x10000, scoped, tag = 'input window, operand 3, single buffered']
    #allocation3 [shape = 's32[2]{0}', space=sflag, size = 0x8, scoped, tag = 'scoped memory for net_forward.1']
    #allocation4 [shape = 'u8[65536]{0}', space=vmem, size = 0x10000, scoped, tag = 'input window, operand 5, single buffered']
    #allocation5 [shape = 's32[1]{0}', space=sflag, size = 0x4, scoped, tag = 'scoped memory for net_forward.1']
    %12 = vsyncpa [#allocation3], 0
    %13 = vsyncpa [#allocation5], 0
    loop: start=0, step=1, limit=4
    $region2: #{net_forward.1} parent=1 // loop_pre_header
      _
    $region3: #{net_forward.1} parent=1 // loop_header
      %s15 = sphi 0, %s19
      %p16 = scmp.ge.s32.totalorder %s15, 4
      %s25 = sphi 0, %s27
      %s28 = sphi 0, %s25
      %s29 = sphi 0, %s28
      %s45 = sphi 0, %s29
      %s49 = sphi 0, %s49
      %s51 = sphi 0, %s49
      %s52 = sphi 0, %s51
      %s66 = sphi 0, %s52
      %s70 = sphi 0, %s70
      %s72 = sphi 0, %s70
      %s73 = sphi 0, %s72
      %s87 = sphi 0, %s73
      %s91 = sphi 0, %s91
      %s93 = sphi 0, %s91
      %s94 = sphi 0, %s93
      %s108 = sphi 0, %s94
      %s112 = sphi 0, %s112
      %s114 = sphi 0, %s112
      %s115 = sphi 0, %s114
      %s129 = sphi 0, %s115
      %s133 = sphi 0, %s133
      %s135 = sphi 0, %s133
      %s136 = sphi 0, %s135
      %s150 = sphi 0, %s136
      %s154 = sphi 0, %s154
      %s156 = sphi 0, %s154
      %s157 = sphi 0, %s156
      %s171 = sphi 0, %s157
      %s177 = sphi 0, %s179
      %s180 = sphi 0, %s177
      %s181 = sphi 0, %s180
      %s197 = sphi 0, %s181
    $region4: #{net_forward.1} parent=1 // loop_header_branch
      %18 = sbr.rel (%p16) target = $region8
    $region5: #{net_forward.1} parent=1 // loop_body
      %s20 = ssub.s32 %s15, 1
      %s21 = ssub.s32 %s15, 2
      %s22 = sadd.s32 %s15, 1
      %s23 = ssub.s32 %s15, %s22
      %p24 = scmp.eq.s32.totalorder %s23, 0
      %s26 = sadd.s32 %s25, 1
      %s27 = scalar_select %p24, %s25, %s26
      %p30 = pneg %p24
      %p31 = scmp.eq.s32.totalorder %s15, 1
      %p32 = por %p30, %p31
      %p33 = scmp.ne.s32.totalorder %s25, %s28
      %p34 = scmp.eq.s32.totalorder %s15, 0
      %p35 = por %p33, %p34
      %p36 = scmp.ne.s32.totalorder %s25, %s28
      %p37 = scmp.eq.s32.totalorder %s20, 1
      %p38 = por %p36, %p37
      %p39 = scmp.ne.s32.totalorder %s28, %s29
      %p40 = scmp.eq.s32.totalorder %s20, 0
      %p41 = por %p39, %p40
      %p42 = scmp.ne.s32.totalorder %s28, %s29
      %p43 = scmp.eq.s32.totalorder %s21, 1
      %p44 = por %p42, %p43
      %p46 = scmp.ne.s32.totalorder %s29, %s45
      %p47 = scmp.eq.s32.totalorder %s21, 0
      %p48 = por %p46, %p47
      %s50 = sadd.s32 %s49, 1
      %p53 = scmp.eq.s32.totalorder %s15, 1
      %p54 = scmp.ne.s32.totalorder %s49, %s51
      %p55 = scmp.eq.s32.totalorder %s15, 0
      %p56 = por %p54, %p55
      %p57 = scmp.ne.s32.totalorder %s49, %s51
      %p58 = scmp.eq.s32.totalorder %s20, 1
      %p59 = por %p57, %p58
      %p60 = scmp.ne.s32.totalorder %s51, %s52
      %p61 = scmp.eq.s32.totalorder %s20, 0
      %p62 = por %p60, %p61
      %p63 = scmp.ne.s32.totalorder %s51, %s52
      %p64 = scmp.eq.s32.totalorder %s21, 1
      %p65 = por %p63, %p64
      %p67 = scmp.ne.s32.totalorder %s52, %s66
      %p68 = scmp.eq.s32.totalorder %s21, 0
      %p69 = por %p67, %p68
      %s71 = sadd.s32 %s70, 1
      %p74 = scmp.eq.s32.totalorder %s15, 1
      %p75 = scmp.ne.s32.totalorder %s70, %s72
      %p76 = scmp.eq.s32.totalorder %s15, 0
      %p77 = por %p75, %p76
      %p78 = scmp.ne.s32.totalorder %s70, %s72
      %p79 = scmp.eq.s32.totalorder %s20, 1
      %p80 = por %p78, %p79
      %p81 = scmp.ne.s32.totalorder %s72, %s73
      %p82 = scmp.eq.s32.totalorder %s20, 0
      %p83 = por %p81, %p82
      %p84 = scmp.ne.s32.totalorder %s72, %s73
      %p85 = scmp.eq.s32.totalorder %s21, 1
      %p86 = por %p84, %p85
      %p88 = scmp.ne.s32.totalorder %s73, %s87
      %p89 = scmp.eq.s32.totalorder %s21, 0
      %p90 = por %p88, %p89
      %s92 = sadd.s32 %s91, 1
      %p95 = scmp.eq.s32.totalorder %s15, 1
      %p96 = scmp.ne.s32.totalorder %s91, %s93
      %p97 = scmp.eq.s32.totalorder %s15, 0
      %p98 = por %p96, %p97
      %p99 = scmp.ne.s32.totalorder %s91, %s93
      %p100 = scmp.eq.s32.totalorder %s20, 1
      %p101 = por %p99, %p100
      %p102 = scmp.ne.s32.totalorder %s93, %s94
      %p103 = scmp.eq.s32.totalorder %s20, 0
      %p104 = por %p102, %p103
      %p105 = scmp.ne.s32.totalorder %s93, %s94
      %p106 = scmp.eq.s32.totalorder %s21, 1
      %p107 = por %p105, %p106
      %p109 = scmp.ne.s32.totalorder %s94, %s108
      %p110 = scmp.eq.s32.totalorder %s21, 0
      %p111 = por %p109, %p110
      %s113 = sadd.s32 %s112, 1
      %p116 = scmp.eq.s32.totalorder %s15, 1
      %p117 = scmp.ne.s32.totalorder %s112, %s114
      %p118 = scmp.eq.s32.totalorder %s15, 0
      %p119 = por %p117, %p118
      %p120 = scmp.ne.s32.totalorder %s112, %s114
      %p121 = scmp.eq.s32.totalorder %s20, 1
      %p122 = por %p120, %p121
      %p123 = scmp.ne.s32.totalorder %s114, %s115
      %p124 = scmp.eq.s32.totalorder %s20, 0
      %p125 = por %p123, %p124
      %p126 = scmp.ne.s32.totalorder %s114, %s115
      %p127 = scmp.eq.s32.totalorder %s21, 1
      %p128 = por %p126, %p127
      %p130 = scmp.ne.s32.totalorder %s115, %s129
      %p131 = scmp.eq.s32.totalorder %s21, 0
      %p132 = por %p130, %p131
      %s134 = sadd.s32 %s133, 1
      %p137 = scmp.eq.s32.totalorder %s15, 1
      %p138 = scmp.ne.s32.totalorder %s133, %s135
      %p139 = scmp.eq.s32.totalorder %s15, 0
      %p140 = por %p138, %p139
      %p141 = scmp.ne.s32.totalorder %s133, %s135
      %p142 = scmp.eq.s32.totalorder %s20, 1
      %p143 = por %p141, %p142
      %p144 = scmp.ne.s32.totalorder %s135, %s136
      %p145 = scmp.eq.s32.totalorder %s20, 0
      %p146 = por %p144, %p145
      %p147 = scmp.ne.s32.totalorder %s135, %s136
      %p148 = scmp.eq.s32.totalorder %s21, 1
      %p149 = por %p147, %p148
      %p151 = scmp.ne.s32.totalorder %s136, %s150
      %p152 = scmp.eq.s32.totalorder %s21, 0
      %p153 = por %p151, %p152
      %s155 = sadd.s32 %s154, 1
      %p158 = scmp.eq.s32.totalorder %s15, 1
      %p159 = scmp.ne.s32.totalorder %s154, %s156
      %p160 = scmp.eq.s32.totalorder %s15, 0
      %p161 = por %p159, %p160
      %p162 = scmp.ne.s32.totalorder %s154, %s156
      %p163 = scmp.eq.s32.totalorder %s20, 1
      %p164 = por %p162, %p163
      %p165 = scmp.ne.s32.totalorder %s156, %s157
      %p166 = scmp.eq.s32.totalorder %s20, 0
      %p167 = por %p165, %p166
      %p168 = scmp.ne.s32.totalorder %s156, %s157
      %p169 = scmp.eq.s32.totalorder %s21, 1
      %p170 = por %p168, %p169
      %p172 = scmp.ne.s32.totalorder %s157, %s171
      %p173 = scmp.eq.s32.totalorder %s21, 0
      %p174 = por %p172, %p173
      %s175 = ssub.s32 %s15, %s22
      %p176 = scmp.eq.s32.totalorder %s175, 0
      %s178 = sadd.s32 %s177, 1
      %s179 = scalar_select %p176, %s177, %s178
      %p182 = pneg %p176
      %p183 = scmp.eq.s32.totalorder %s15, 1
      %p184 = por %p182, %p183
      %p185 = scmp.ne.s32.totalorder %s177, %s180
      %p186 = scmp.eq.s32.totalorder %s15, 0
      %p187 = por %p185, %p186
      %p188 = scmp.ne.s32.totalorder %s177, %s180
      %p189 = scmp.eq.s32.totalorder %s20, 1
      %p190 = por %p188, %p189
      %p191 = scmp.ne.s32.totalorder %s180, %s181
      %p192 = scmp.eq.s32.totalorder %s20, 0
      %p193 = por %p191, %p192
      %p194 = scmp.ne.s32.totalorder %s180, %s181
      %p195 = scmp.eq.s32.totalorder %s21, 1
      %p196 = por %p194, %p195
      %p198 = scmp.ne.s32.totalorder %s181, %s197
      %p199 = scmp.eq.s32.totalorder %s21, 0
      %p200 = por %p198, %p199
      %p201 = scmp.le.s32.totalorder 1, %s15
      %p202 = scmp.lt.s32.totalorder %s15, 3
      %p203 = pnand %p201, %p202
      %p204 = pneg %p203
      // Predicated region
      $region9: #{net_forward.1} parent=5 // pred_check
        _
      $region10: #{net_forward.1} parent=5 // pred_check_branch
        %206 = sbr.rel (%p203) target = $region12
      $region11: #{net_forward.1} parent=5 // pred_region
        %s207 = ssub.s32 %s15, 1
        // Predicated region
        $region13: #{net_forward.1} parent=11 // pred_check
          %p208 = pneg %p62
        $region14: #{net_forward.1} parent=11 // pred_check_branch
          %210 = sbr.rel (%p208) target = $region16
        $region15: #{net_forward.1} parent=11 // pred_region
          _
        $region16: #{net_forward.1} parent=11 // pred_fallthru
          _
        // Predicated region
        $region17: #{net_forward.1} parent=11 // pred_check
          %p211 = pneg %p83
        $region18: #{net_forward.1} parent=11 // pred_check_branch
          %213 = sbr.rel (%p211) target = $region20
        $region19: #{net_forward.1} parent=11 // pred_region
          _
        $region20: #{net_forward.1} parent=11 // pred_fallthru
          _
        // Predicated region
        $region21: #{net_forward.1} parent=11 // pred_check
          %p214 = pneg %p104
        $region22: #{net_forward.1} parent=11 // pred_check_branch
          %216 = sbr.rel (%p214) target = $region24
        $region23: #{net_forward.1} parent=11 // pred_region
          %s218 = ssub.s32 2048, 2048
          %219 = vsyncadd [#allocation3], %s218
          %s220 = sshll.u32 [#allocation2], 4
          %s221 = int_to_ptr.vmem [resolvable:$true] %s220
          %226 = dma.hbm_to_vmem [thread:$0]  %s3, 2048, %s221, [#allocation3], 128, 128, 8
        $region24: #{net_forward.1} parent=11 // pred_fallthru
          _
        // Predicated region
        $region25: #{net_forward.1} parent=11 // pred_check
          %p227 = pneg %p125
        $region26: #{net_forward.1} parent=11 // pred_check_branch
          %229 = sbr.rel (%p227) target = $region28
        $region27: #{net_forward.1} parent=11 // pred_region
          _
        $region28: #{net_forward.1} parent=11 // pred_fallthru
          _
        // Predicated region
        $region29: #{net_forward.1} parent=11 // pred_check
          %p230 = pneg %p146
        $region30: #{net_forward.1} parent=11 // pred_check_branch
          %232 = sbr.rel (%p230) target = $region32
        $region31: #{net_forward.1} parent=11 // pred_region
          %s234 = ssub.s32 2048, 2048
          %235 = vsyncadd [#allocation5], %s234
          %s236 = sshll.u32 [#allocation4], 4
          %s237 = int_to_ptr.vmem [resolvable:$true] %s236
          %242 = dma.hbm_to_vmem [thread:$0]  %s5, 2048, %s237, [#allocation5], 128, 128, 8
        $region32: #{net_forward.1} parent=11 // pred_fallthru
          _
        // Predicated region
        $region33: #{net_forward.1} parent=11 // pred_check
          %p243 = pneg %p167
        $region34: #{net_forward.1} parent=11 // pred_check_branch
          %245 = sbr.rel (%p243) target = $region36
        $region35: #{net_forward.1} parent=11 // pred_region
          _
        $region36: #{net_forward.1} parent=11 // pred_fallthru
          _
      $region12: #{net_forward.1} parent=5 // pred_fallthru
        _
      %p246 = scmp.lt.s32.totalorder %s15, 2
      // Predicated region
      $region37: #{net_forward.1} parent=5 // pred_check
        %p247 = pneg %p246
      $region38: #{net_forward.1} parent=5 // pred_check_branch
        %249 = sbr.rel (%p247) target = $region40
      $region39: #{net_forward.1} parent=5 // pred_region
        // Predicated region
        $region41: #{net_forward.1} parent=39 // pred_check
          %p250 = pneg %p35
        $region42: #{net_forward.1} parent=39 // pred_check_branch
          %252 = sbr.rel (%p250) target = $region44
        $region43: #{net_forward.1} parent=39 // pred_region
          %s253 = smul.u32 2, %s15
          %p254 = scmp.lt.s32.totalorder %s253, 3
          %s255 = scalar_select %p254, %s253, 3
          %s256 = smul.addr %s255, 8
          %s257 = scalar_lea.vmem %s0, %s256
          %s258 = smul.u32 2, %s15
        $region44: #{net_forward.1} parent=39 // pred_fallthru
          _
      $region40: #{net_forward.1} parent=5 // pred_fallthru
        _
      %p259 = scmp.le.s32.totalorder 1, %s15
      %p260 = scmp.lt.s32.totalorder %s15, 3
      %p261 = pnand %p259, %p260
      %p262 = pneg %p261
      // Predicated region
      $region45: #{net_forward.1} parent=5 // pred_check
        _
      $region46: #{net_forward.1} parent=5 // pred_check_branch
        %264 = sbr.rel (%p261) target = $region48
      $region47: #{net_forward.1} parent=5 // pred_region
        %s265 = ssub.s32 %s15, 1
        // Predicated region
        $region49: #{net_forward.1} parent=47 // pred_check
          %p266 = pneg %p104
        $region50: #{net_forward.1} parent=47 // pred_check_branch
          %268 = sbr.rel (%p266) target = $region52
        $region51: #{net_forward.1} parent=47 // pred_region
          %269 = dma.done [#allocation3], 2048
        $region52: #{net_forward.1} parent=47 // pred_fallthru
          _
        // Predicated region
        $region53: #{net_forward.1} parent=47 // pred_check
          %p270 = pneg %p146
        $region54: #{net_forward.1} parent=47 // pred_check_branch
          %272 = sbr.rel (%p270) target = $region56
        $region55: #{net_forward.1} parent=47 // pred_region
          %273 = dma.done [#allocation5], 2048
        $region56: #{net_forward.1} parent=47 // pred_fallthru
          _
        %s274 = smul.u32 2, %s20
        %p275 = scmp.lt.s32.totalorder %s274, 3
        %s276 = scalar_select %p275, %s274, 3
        %s277 = smul.addr %s276, 8
        %s278 = scalar_lea.vmem %s0, %s277
        %p279 = pneg %p41
        %p280 = pneg %p38
        %p281 = pneg %p62
        %p282 = pneg %p59
        %p283 = pneg %p83
        %p284 = pneg %p80
        %p285 = pneg %p104
        %p286 = pneg %p101
        %p287 = pneg %p125
        %p288 = pneg %p122
        %p289 = pneg %p146
        %p290 = pneg %p143
        %p291 = pneg %p167
        %p292 = pneg %p164
        %p293 = pneg %p193
        %p294 = pneg %p190
        %s295 = smul.u32 2, %s20
        %p296 = scmp.lt.s32.totalorder %s295, 3
        %s297 = scalar_select %p296, %s295, 3
        %s298 = smul.addr %s297, 8
        %s299 = scalar_lea.vmem %s7, %s298
        %s300 = smul.u32 2, %s20
        %p301 = scmp.lt.s32.totalorder %s300, 3
        %s302 = scalar_select %p301, %s300, 3
        %s303 = smul.addr %s302, 8
        %s304 = scalar_lea.vmem %s0, %s303
        %s305 = smul.u32 2, %s20
        %s306 = smul.u32 2, %s20
        %p307 = scmp.lt.s32.totalorder %s306, 3
        %s308 = scalar_select %p307, %s306, 3
        %s309 = smul.addr %s308, 8
        %s310 = scalar_lea.vmem %s7, %s309
        %s311 = smul.u32 2, %s20
        %v312 = vld [vmem:[%s304] sm:$0xff]
        %v313 = vld [vmem:[%s304 + $0x8] sm:$0xff]
        %v314 = vld [vmem:[%s1] sm:$0xff]
        %v315 = vld [vmem:[%s1 + $0x8] sm:$0xff]
        %v316 = vld [vmem:[%s2] sm:$0x1]
        %v318 = vlaneseq
        %v319 = vshrl.u32 %v318, 7
        %v320 = vsub.s32 0, %v319
        %v321 = vrot.slane %v316, %v320
        %vm323 = vcmask 130048
        %v325 = vsel %vm323, %v312, 0
        %v328 = vsel %vm323, %v313, 0
        %330 = vmatprep.subr.mxu0 0.0
        %331 = vmatpush1.msra.mxu0 %v314
        %332 = vmatprep.subr.mxu0 0.0
        %333 = vmatpush1.msra.mxu0 %v315
        %334 = vmatprep.subr.mxu0 0.0
        %335 = vmatpush1.msra.mxu0 0.0
        %336 = vmatprep.subr.mxu0 0.0
        %337 = vmatpush1.msra.mxu0 0.0
        %338 = vmatprep.subr.mxu0 0.0
        %339 = vmatpush1.msra.mxu0 0.0
        %340 = vmatprep.subr.mxu0 0.0
        %341 = vmatpush1.msra.mxu0 0.0
        %342 = vmatprep.subr.mxu0 0.0
        %343 = vmatpush1.msra.mxu0 0.0
        %344 = vmatprep.subr.mxu0 0.0
        %345 = vmatpush1.msra.mxu0 0.0
        %346 = vmatprep.subr.mxu0 0.0
        %347 = vmatpush1.msra.mxu0 0.0
        %348 = vmatprep.subr.mxu0 0.0
        %349 = vmatpush1.msra.mxu0 0.0
        %350 = vmatprep.subr.mxu0 0.0
        %351 = vmatpush1.msra.mxu0 0.0
        %352 = vmatprep.subr.mxu0 0.0
        %353 = vmatpush1.msra.mxu0 0.0
        %354 = vmatprep.subr.mxu0 0.0
        %355 = vmatpush1.msra.mxu0 0.0
        %356 = vmatprep.subr.mxu0 0.0
        %357 = vmatpush1.msra.mxu0 0.0
        %358 = vmatprep.subr.mxu0 0.0
        %359 = vmatpush1.msra.mxu0 0.0
        %360 = vmatprep.subr.mxu0 0.0
        %361 = vmatpush1.msra.mxu0 0.0
        %362 = vmatprep.subr.mxu0 0.0
        %363 = vmatpush1.msra.mxu0 0.0
        %364 = vmatprep.subr.mxu0 0.0
        %365 = vmatpush1.msra.mxu0 0.0
        %366 = vmatprep.subr.mxu0 0.0
        %367 = vmatpush1.msra.mxu0 0.0
        %368 = vmatprep.subr.mxu0 0.0
        %369 = vmatpush1.msra.mxu0 0.0
        %370 = vmatprep.subr.mxu0 0.0
        %371 = vmatpush1.msra.mxu0 0.0
        %372 = vmatprep.subr.mxu0 0.0
        %373 = vmatpush1.msra.mxu0 0.0
        %374 = vmatprep.subr.mxu0 0.0
        %375 = vmatpush1.msra.mxu0 0.0
        %376 = vmatprep.subr.mxu0 0.0
        %377 = vmatpush1.msra.mxu0 0.0
        %378 = vmatprep.subr.mxu0 0.0
        %379 = vmatpush1.msra.mxu0 0.0
        %380 = vmatprep.subr.mxu0 0.0
        %381 = vmatpush1.msra.mxu0 0.0
        %382 = vmatprep.subr.mxu0 0.0
        %383 = vmatpush1.msra.mxu0 0.0
        %384 = vmatprep.subr.mxu0 0.0
        %385 = vmatpush1.msra.mxu0 0.0
        %386 = vmatprep.subr.mxu0 0.0
        %387 = vmatpush1.msra.mxu0 0.0
        %388 = vmatprep.subr.mxu0 0.0
        %389 = vmatpush1.msra.mxu0 0.0
        %390 = vmatprep.subr.mxu0 0.0
        %391 = vmatpush1.msra.mxu0 0.0
        %392 = vmatprep.subr.mxu0 0.0
        %393 = vmatpush1.msra.mxu0 0.0
        %394 = vmatprep.mubr.f32.mxu0 0.0
        %395 = vmatmul.mubr.f32.gmra.mrb[0].mxu0 %v325
        %v396 = vpop.f32.mrb[0].mxu0
        %v397 = vadd.f32 %v321, %v396
        %v398 = vpop.f32.mrb[0].mxu0
        %399 = vmatprep.mubr.f32.mxu0 0.0
        %400 = vmatmul.mubr.f32.gmra.mrb[0].mxu0 %v328
        %v401 = vpop.f32.mrb[0].mxu0
        %v402 = vadd.f32 %v321, %v401
        %v403 = vpop.f32.mrb[0].mxu0
        %404 = vdwg.mxu0
        %v405 = vmul.f32 %v397, 0.5
        %v406 = vmul.f32 %v402, 0.5
        %v407 = vmul.f32 %v397, 0.70710677
        %v408 = vmul.f32 %v402, 0.70710677
        %v409 = verf.f32.pop %v407
        %v410 = verf.f32.pop %v408
        %v411 = vadd.f32 %v409, 1.0
        %v412 = vadd.f32 %v410, 1.0
        %v413 = vmul.f32 %v405, %v411
        %v414 = vmul.f32 %v406, %v412
        %v415 = vld [vmem:[#allocation2] sm:$0xff]
        %v416 = vld [vmem:[#allocation2 + $0x8] sm:$0xff]
        %v417 = vld [vmem:[#allocation2 + $0x10] sm:$0xff]
        %v418 = vld [vmem:[#allocation2 + $0x18] sm:$0xff]
        %v419 = vld [vmem:[#allocation2 + $0x20] sm:$0xff]
        %v420 = vld [vmem:[#allocation2 + $0x28] sm:$0xff]
        %v421 = vld [vmem:[#allocation2 + $0x30] sm:$0xff]
        %v422 = vld [vmem:[#allocation2 + $0x38] sm:$0xff]
        %v423 = vld [vmem:[#allocation2 + $0x40] sm:$0xff]
        %v424 = vld [vmem:[#allocation2 + $0x48] sm:$0xff]
        %v425 = vld [vmem:[#allocation2 + $0x50] sm:$0xff]
        %v426 = vld [vmem:[#allocation2 + $0x58] sm:$0xff]
        %v427 = vld [vmem:[#allocation2 + $0x60] sm:$0xff]
        %v428 = vld [vmem:[#allocation2 + $0x68] sm:$0xff]
        %v429 = vld [vmem:[#allocation2 + $0x70] sm:$0xff]
        %v430 = vld [vmem:[#allocation2 + $0x78] sm:$0xff]
        %v431 = vld [vmem:[%s4] sm:$0x1]
        %v433 = vlaneseq
        %v434 = vshrl.u32 %v433, 7
        %v435 = vsub.s32 0, %v434
        %v436 = vrot.slane %v431, %v435
        %438 = vmatprep.subr.mxu0 0.0
        %439 = vmatpush1.msra.mxu0 %v415
        %440 = vmatprep.subr.mxu0 0.0
        %441 = vmatpush1.msra.mxu0 %v416
        %442 = vmatprep.subr.mxu0 0.0
        %443 = vmatpush1.msra.mxu0 %v417
        %444 = vmatprep.subr.mxu0 0.0
        %445 = vmatpush1.msra.mxu0 %v418
        %446 = vmatprep.subr.mxu0 0.0
        %447 = vmatpush1.msra.mxu0 %v419
        %448 = vmatprep.subr.mxu0 0.0
        %449 = vmatpush1.msra.mxu0 %v420
        %450 = vmatprep.subr.mxu0 0.0
        %451 = vmatpush1.msra.mxu0 %v421
        %452 = vmatprep.subr.mxu0 0.0
        %453 = vmatpush1.msra.mxu0 %v422
        %454 = vmatprep.subr.mxu0 0.0
        %455 = vmatpush1.msra.mxu0 %v423
        %456 = vmatprep.subr.mxu0 0.0
        %457 = vmatpush1.msra.mxu0 %v424
        %458 = vmatprep.subr.mxu0 0.0
        %459 = vmatpush1.msra.mxu0 %v425
        %460 = vmatprep.subr.mxu0 0.0
        %461 = vmatpush1.msra.mxu0 %v426
        %462 = vmatprep.subr.mxu0 0.0
        %463 = vmatpush1.msra.mxu0 %v427
        %464 = vmatprep.subr.mxu0 0.0
        %465 = vmatpush1.msra.mxu0 %v428
        %466 = vmatprep.subr.mxu0 0.0
        %467 = vmatpush1.msra.mxu0 %v429
        %468 = vmatprep.subr.mxu0 0.0
        %469 = vmatpush1.msra.mxu0 %v430
        %470 = vmatprep.subr.mxu0 0.0
        %471 = vmatpush1.msra.mxu0 0.0
        %472 = vmatprep.subr.mxu0 0.0
        %473 = vmatpush1.msra.mxu0 0.0
        %474 = vmatprep.subr.mxu0 0.0
        %475 = vmatpush1.msra.mxu0 0.0
        %476 = vmatprep.subr.mxu0 0.0
        %477 = vmatpush1.msra.mxu0 0.0
        %478 = vmatprep.subr.mxu0 0.0
        %479 = vmatpush1.msra.mxu0 0.0
        %480 = vmatprep.subr.mxu0 0.0
        %481 = vmatpush1.msra.mxu0 0.0
        %482 = vmatprep.subr.mxu0 0.0
        %483 = vmatpush1.msra.mxu0 0.0
        %484 = vmatprep.subr.mxu0 0.0
        %485 = vmatpush1.msra.mxu0 0.0
        %486 = vmatprep.subr.mxu0 0.0
        %487 = vmatpush1.msra.mxu0 0.0
        %488 = vmatprep.subr.mxu0 0.0
        %489 = vmatpush1.msra.mxu0 0.0
        %490 = vmatprep.subr.mxu0 0.0
        %491 = vmatpush1.msra.mxu0 0.0
        %492 = vmatprep.subr.mxu0 0.0
        %493 = vmatpush1.msra.mxu0 0.0
        %494 = vmatprep.subr.mxu0 0.0
        %495 = vmatpush1.msra.mxu0 0.0
        %496 = vmatprep.subr.mxu0 0.0
        %497 = vmatpush1.msra.mxu0 0.0
        %498 = vmatprep.subr.mxu0 0.0
        %499 = vmatpush1.msra.mxu0 0.0
        %500 = vmatprep.subr.mxu0 0.0
        %501 = vmatpush1.msra.mxu0 0.0
        %502 = vmatprep.mubr.f32.mxu0 0.0
        %503 = vmatmul.mubr.f32.gmra.mrb[0].mxu0 %v413
        %v504 = vpop.f32.mrb[0].mxu0
        %v505 = vadd.f32 %v436, %v504
        %v506 = vpop.f32.mrb[0].mxu0
        %507 = vmatprep.mubr.f32.mxu0 0.0
        %508 = vmatmul.mubr.f32.gmra.mrb[0].mxu0 %v414
        %v509 = vpop.f32.mrb[0].mxu0
        %v510 = vadd.f32 %v436, %v509
        %v511 = vpop.f32.mrb[0].mxu0
        %512 = vdwg.mxu0
        %v513 = vmul.f32 %v505, 0.5
        %v514 = vmul.f32 %v510, 0.5
        %v515 = vmul.f32 %v505, 0.70710677
        %v516 = vmul.f32 %v510, 0.70710677
        %v517 = verf.f32.pop %v515
        %v518 = verf.f32.pop %v516
        %v519 = vadd.f32 %v517, 1.0
        %v520 = vadd.f32 %v518, 1.0
        %v521 = vmul.f32 %v513, %v519
        %v522 = vmul.f32 %v514, %v520
        %v523 = vld [vmem:[#allocation4] sm:$0xff]
        %v524 = vld [vmem:[#allocation4 + $0x8] sm:$0xff]
        %v525 = vld [vmem:[#allocation4 + $0x10] sm:$0xff]
        %v526 = vld [vmem:[#allocation4 + $0x18] sm:$0xff]
        %v527 = vld [vmem:[#allocation4 + $0x20] sm:$0xff]
        %v528 = vld [vmem:[#allocation4 + $0x28] sm:$0xff]
        %v529 = vld [vmem:[#allocation4 + $0x30] sm:$0xff]
        %v530 = vld [vmem:[#allocation4 + $0x38] sm:$0xff]
        %v531 = vld [vmem:[#allocation4 + $0x40] sm:$0xff]
        %v532 = vld [vmem:[#allocation4 + $0x48] sm:$0xff]
        %v533 = vld [vmem:[#allocation4 + $0x50] sm:$0xff]
        %v534 = vld [vmem:[#allocation4 + $0x58] sm:$0xff]
        %v535 = vld [vmem:[#allocation4 + $0x60] sm:$0xff]
        %v536 = vld [vmem:[#allocation4 + $0x68] sm:$0xff]
        %v537 = vld [vmem:[#allocation4 + $0x70] sm:$0xff]
        %v538 = vld [vmem:[#allocation4 + $0x78] sm:$0xff]
        %v539 = vld [vmem:[%s6] sm:$0x1]
        %v541 = vlaneseq
        %v542 = vshrl.u32 %v541, 7
        %v543 = vsub.s32 0, %v542
        %v544 = vrot.slane %v539, %v543
        %546 = vmatprep.subr.mxu0 0.0
        %547 = vmatpush1.msra.mxu0 %v523
        %548 = vmatprep.subr.mxu0 0.0
        %549 = vmatpush1.msra.mxu0 %v524
        %550 = vmatprep.subr.mxu0 0.0
        %551 = vmatpush1.msra.mxu0 %v525
        %552 = vmatprep.subr.mxu0 0.0
        %553 = vmatpush1.msra.mxu0 %v526
        %554 = vmatprep.subr.mxu0 0.0
        %555 = vmatpush1.msra.mxu0 %v527
        %556 = vmatprep.subr.mxu0 0.0
        %557 = vmatpush1.msra.mxu0 %v528
        %558 = vmatprep.subr.mxu0 0.0
        %559 = vmatpush1.msra.mxu0 %v529
        %560 = vmatprep.subr.mxu0 0.0
        %561 = vmatpush1.msra.mxu0 %v530
        %562 = vmatprep.subr.mxu0 0.0
        %563 = vmatpush1.msra.mxu0 %v531
        %564 = vmatprep.subr.mxu0 0.0
        %565 = vmatpush1.msra.mxu0 %v532
        %566 = vmatprep.subr.mxu0 0.0
        %567 = vmatpush1.msra.mxu0 %v533
        %568 = vmatprep.subr.mxu0 0.0
        %569 = vmatpush1.msra.mxu0 %v534
        %570 = vmatprep.subr.mxu0 0.0
        %571 = vmatpush1.msra.mxu0 %v535
        %572 = vmatprep.subr.mxu0 0.0
        %573 = vmatpush1.msra.mxu0 %v536
        %574 = vmatprep.subr.mxu0 0.0
        %575 = vmatpush1.msra.mxu0 %v537
        %576 = vmatprep.subr.mxu0 0.0
        %577 = vmatpush1.msra.mxu0 %v538
        %578 = vmatprep.subr.mxu0 0.0
        %579 = vmatpush1.msra.mxu0 0.0
        %580 = vmatprep.subr.mxu0 0.0
        %581 = vmatpush1.msra.mxu0 0.0
        %582 = vmatprep.subr.mxu0 0.0
        %583 = vmatpush1.msra.mxu0 0.0
        %584 = vmatprep.subr.mxu0 0.0
        %585 = vmatpush1.msra.mxu0 0.0
        %586 = vmatprep.subr.mxu0 0.0
        %587 = vmatpush1.msra.mxu0 0.0
        %588 = vmatprep.subr.mxu0 0.0
        %589 = vmatpush1.msra.mxu0 0.0
        %590 = vmatprep.subr.mxu0 0.0
        %591 = vmatpush1.msra.mxu0 0.0
        %592 = vmatprep.subr.mxu0 0.0
        %593 = vmatpush1.msra.mxu0 0.0
        %594 = vmatprep.subr.mxu0 0.0
        %595 = vmatpush1.msra.mxu0 0.0
        %596 = vmatprep.subr.mxu0 0.0
        %597 = vmatpush1.msra.mxu0 0.0
        %598 = vmatprep.subr.mxu0 0.0
        %599 = vmatpush1.msra.mxu0 0.0
        %600 = vmatprep.subr.mxu0 0.0
        %601 = vmatpush1.msra.mxu0 0.0
        %602 = vmatprep.subr.mxu0 0.0
        %603 = vmatpush1.msra.mxu0 0.0
        %604 = vmatprep.subr.mxu0 0.0
        %605 = vmatpush1.msra.mxu0 0.0
        %606 = vmatprep.subr.mxu0 0.0
        %607 = vmatpush1.msra.mxu0 0.0
        %608 = vmatprep.subr.mxu0 0.0
        %609 = vmatpush1.msra.mxu0 0.0
        %610 = vmatprep.mubr.f32.mxu0 0.0
        %611 = vmatmul.mubr.f32.gmra.mrb[0].mxu0 %v521
        %v612 = vpop.f32.mrb[0].mxu0
        %v613 = vadd.f32 %v544, %v612
        %v614 = vpop.f32.mrb[0].mxu0
        %615 = vmatprep.mubr.f32.mxu0 0.0
        %616 = vmatmul.mubr.f32.gmra.mrb[0].mxu0 %v522
        %v617 = vpop.f32.mrb[0].mxu0
        %v618 = vadd.f32 %v544, %v617
        %v619 = vpop.f32.mrb[0].mxu0
        %620 = vdwg.mxu0
        %621 = vst [vmem:[%s310] sm:$0xff] %v613
        %622 = vst [vmem:[%s310 + $0x8] sm:$0xff] %v618
        %s623 = smul.u32 2, %s20
        %p624 = scmp.lt.s32.totalorder %s623, 3
        %s625 = scalar_select %p624, %s623, 3
        %s626 = smul.addr %s625, 8
        %s627 = scalar_lea.vmem %s7, %s626
        // Predicated region
        $region57: #{net_forward.1} parent=47 // pred_check
          %p628 = pneg %p190
        $region58: #{net_forward.1} parent=47 // pred_check_branch
          %630 = sbr.rel (%p628) target = $region60
        $region59: #{net_forward.1} parent=47 // pred_region
          %s631 = smul.u32 2, %s20
        $region60: #{net_forward.1} parent=47 // pred_fallthru
          _
      $region48: #{net_forward.1} parent=5 // pred_fallthru
        _
      %p632 = scmp.le.s32.totalorder 2, %s15
      // Predicated region
      $region61: #{net_forward.1} parent=5 // pred_check
        %p633 = pneg %p632
      $region62: #{net_forward.1} parent=5 // pred_check_branch
        %635 = sbr.rel (%p633) target = $region64
      $region63: #{net_forward.1} parent=5 // pred_region
        %s636 = ssub.s32 %s15, 2
        // Predicated region
        $region65: #{net_forward.1} parent=63 // pred_check
          %p637 = pneg %p196
        $region66: #{net_forward.1} parent=63 // pred_check_branch
          %639 = sbr.rel (%p637) target = $region68
        $region67: #{net_forward.1} parent=63 // pred_region
          %s640 = smul.u32 2, %s21
          %p641 = scmp.lt.s32.totalorder %s640, 3
          %s642 = scalar_select %p641, %s640, 3
          %s643 = smul.addr %s642, 8
          %s644 = scalar_lea.vmem %s7, %s643
        $region68: #{net_forward.1} parent=63 // pred_fallthru
          _
      $region64: #{net_forward.1} parent=5 // pred_fallthru
        _
    $region6: #{net_forward.1} parent=1 // loop_footer
      %s19 = sadd.s32 1, %s15
    $region7: #{net_forward.1} parent=1 // loop_footer_branch
      %14 = sbr.rel target = $region3
    $region8: #{net_forward.1} parent=1 // loop_exit
      _
    %645 = vsyncpa [#allocation3], 1
    %s646 = scalar_lea.sflag [#allocation3], 1
    %647 = vsyncpa %s646, 1
    %648 = vsyncpa [#allocation5], 1

// kernel: net_forward.1
$region0: #{net_forward.1}
  #allocation0 [shape = 'u32[]', space=smem, size = 0x4, offset = 0x4, fixed_abs, tag = 'smem constant byte address 0x4 - core index']
  #allocation1 [shape = 'u32[144,128]{1,0:T(1,128)}', space=vmem, size = 0x12000, scoped, tag = 'internal scratch']
  %s0 = inlined_call_operand.vmem [shape: f32[32,16], index: 0, kind: input, shape index: {}]
  %s1 = inlined_call_operand.vmem [shape: f32[16,128], index: 1, kind: input, shape index: {}]
  %s2 = inlined_call_operand.vmem [shape: f32[1,128], index: 2, kind: input, shape index: {}]
  %s3 = inlined_call_operand.hbm [shape: f32[128,128], index: 3, kind: input, shape index: {}]
  %s4 = inlined_call_operand.vmem [shape: f32[1,128], index: 4, kind: input, shape index: {}]
  %s5 = inlined_call_operand.hbm [shape: f32[128,128], index: 5, kind: input, shape index: {}]
  %s6 = inlined_call_operand.vmem [shape: f32[1,128], index: 6, kind: input, shape index: {}]
  %s7 = inlined_call_operand.vmem [shape: f32[32,128], index: 7, kind: output, shape index: {}]
  %s8 = sld [smem:[#allocation0]]
  $region69: #{net_forward.1} parent=0
    _
  %s10 = ssub.s32 1, %s8
  %s11 = scalar_select 0, %s10, %s8
  $region1: #{net_forward.1} parent=0
    #allocation2 [shape = 'u8[65536]{0}', space=vmem, size = 0x10000, scoped, tag = 'input window, operand 3, single buffered']
    #allocation3 [shape = 's32[2]{0}', space=sflag, size = 0x8, scoped, tag = 'scoped memory for net_forward.1']
    #allocation4 [shape = 'u8[65536]{0}', space=vmem, size = 0x10000, scoped, tag = 'input window, operand 5, single buffered']
    #allocation5 [shape = 's32[1]{0}', space=sflag, size = 0x4, scoped, tag = 'scoped memory for net_forward.1']
    %12 = vsyncpa [#allocation3], 0
    %13 = vsyncpa [#allocation5], 0
    loop: start=0, step=1, limit=4
    $region2: #{net_forward.1} parent=1 // loop_pre_header
      _
    $region3: #{net_forward.1} parent=1 // loop_header
      %s15 = sphi 0, %s19
      %p16 = scmp.ge.s32.totalorder %s15, 4
      %s25 = sphi 0, %s27
      %s28 = sphi 0, %s25
      %s29 = sphi 0, %s28
      %s45 = sphi 0, %s29
      %s49 = sphi 0, %s49
      %s51 = sphi 0, %s49
      %s52 = sphi 0, %s51
      %s66 = sphi 0, %s52
      %s70 = sphi 0, %s70
      %s72 = sphi 0, %s70
      %s73 = sphi 0, %s72
      %s87 = sphi 0, %s73
      %s91 = sphi 0, %s91
      %s93 = sphi 0, %s91
      %s94 = sphi 0, %s93
      %s108 = sphi 0, %s94
      %s112 = sphi 0, %s112
      %s114 = sphi 0, %s112
      %s115 = sphi 0, %s114
      %s129 = sphi 0, %s115
      %s133 = sphi 0, %s133
      %s135 = sphi 0, %s133
      %s136 = sphi 0, %s135
      %s150 = sphi 0, %s136
      %s154 = sphi 0, %s154
      %s156 = sphi 0, %s154
      %s157 = sphi 0, %s156
      %s171 = sphi 0, %s157
      %s177 = sphi 0, %s179
      %s180 = sphi 0, %s177
      %s181 = sphi 0, %s180
      %s197 = sphi 0, %s181
    $region4: #{net_forward.1} parent=1 // loop_header_branch
      %18 = sbr.rel (%p16) target = $region8
    $region5: #{net_forward.1} parent=1 // loop_body
      %s20 = ssub.s32 %s15, 1
      %s21 = ssub.s32 %s15, 2
      %s22 = sadd.s32 %s15, 1
      %s23 = ssub.s32 %s15, %s22
      %p24 = scmp.eq.s32.totalorder %s23, 0
      %s26 = sadd.s32 %s25, 1
      %s27 = scalar_select %p24, %s25, %s26
      %p30 = pneg %p24
      %p31 = scmp.eq.s32.totalorder %s15, 1
      %p32 = por %p30, %p31
      %p33 = scmp.ne.s32.totalorder %s25, %s28
      %p34 = scmp.eq.s32.totalorder %s15, 0
      %p35 = por %p33, %p34
      %p36 = scmp.ne.s32.totalorder %s25, %s28
      %p37 = scmp.eq.s32.totalorder %s20, 1
      %p38 = por %p36, %p37
      %p39 = scmp.ne.s32.totalorder %s28, %s29
      %p40 = scmp.eq.s32.totalorder %s20, 0
      %p41 = por %p39, %p40
      %p42 = scmp.ne.s32.totalorder %s28, %s29
      %p43 = scmp.eq.s32.totalorder %s21, 1
      %p44 = por %p42, %p43
      %p46 = scmp.ne.s32.totalorder %s29, %s45
      %p47 = scmp.eq.s32.totalorder %s21, 0
      %p48 = por %p46, %p47
      %s50 = sadd.s32 %s49, 1
      %p53 = scmp.eq.s32.totalorder %s15, 1
      %p54 = scmp.ne.s32.totalorder %s49, %s51
      %p55 = scmp.eq.s32.totalorder %s15, 0
      %p56 = por %p54, %p55
      %p57 = scmp.ne.s32.totalorder %s49, %s51
      %p58 = scmp.eq.s32.totalorder %s20, 1
      %p59 = por %p57, %p58
      %p60 = scmp.ne.s32.totalorder %s51, %s52
      %p61 = scmp.eq.s32.totalorder %s20, 0
      %p62 = por %p60, %p61
      %p63 = scmp.ne.s32.totalorder %s51, %s52
      %p64 = scmp.eq.s32.totalorder %s21, 1
      %p65 = por %p63, %p64
      %p67 = scmp.ne.s32.totalorder %s52, %s66
      %p68 = scmp.eq.s32.totalorder %s21, 0
      %p69 = por %p67, %p68
      %s71 = sadd.s32 %s70, 1
      %p74 = scmp.eq.s32.totalorder %s15, 1
      %p75 = scmp.ne.s32.totalorder %s70, %s72
      %p76 = scmp.eq.s32.totalorder %s15, 0
      %p77 = por %p75, %p76
      %p78 = scmp.ne.s32.totalorder %s70, %s72
      %p79 = scmp.eq.s32.totalorder %s20, 1
      %p80 = por %p78, %p79
      %p81 = scmp.ne.s32.totalorder %s72, %s73
      %p82 = scmp.eq.s32.totalorder %s20, 0
      %p83 = por %p81, %p82
      %p84 = scmp.ne.s32.totalorder %s72, %s73
      %p85 = scmp.eq.s32.totalorder %s21, 1
      %p86 = por %p84, %p85
      %p88 = scmp.ne.s32.totalorder %s73, %s87
      %p89 = scmp.eq.s32.totalorder %s21, 0
      %p90 = por %p88, %p89
      %s92 = sadd.s32 %s91, 1
      %p95 = scmp.eq.s32.totalorder %s15, 1
      %p96 = scmp.ne.s32.totalorder %s91, %s93
      %p97 = scmp.eq.s32.totalorder %s15, 0
      %p98 = por %p96, %p97
      %p99 = scmp.ne.s32.totalorder %s91, %s93
      %p100 = scmp.eq.s32.totalorder %s20, 1
      %p101 = por %p99, %p100
      %p102 = scmp.ne.s32.totalorder %s93, %s94
      %p103 = scmp.eq.s32.totalorder %s20, 0
      %p104 = por %p102, %p103
      %p105 = scmp.ne.s32.totalorder %s93, %s94
      %p106 = scmp.eq.s32.totalorder %s21, 1
      %p107 = por %p105, %p106
      %p109 = scmp.ne.s32.totalorder %s94, %s108
      %p110 = scmp.eq.s32.totalorder %s21, 0
      %p111 = por %p109, %p110
      %s113 = sadd.s32 %s112, 1
      %p116 = scmp.eq.s32.totalorder %s15, 1
      %p117 = scmp.ne.s32.totalorder %s112, %s114
      %p118 = scmp.eq.s32.totalorder %s15, 0
      %p119 = por %p117, %p118
      %p120 = scmp.ne.s32.totalorder %s112, %s114
      %p121 = scmp.eq.s32.totalorder %s20, 1
      %p122 = por %p120, %p121
      %p123 = scmp.ne.s32.totalorder %s114, %s115
      %p124 = scmp.eq.s32.totalorder %s20, 0
      %p125 = por %p123, %p124
      %p126 = scmp.ne.s32.totalorder %s114, %s115
      %p127 = scmp.eq.s32.totalorder %s21, 1
      %p128 = por %p126, %p127
      %p130 = scmp.ne.s32.totalorder %s115, %s129
      %p131 = scmp.eq.s32.totalorder %s21, 0
      %p132 = por %p130, %p131
      %s134 = sadd.s32 %s133, 1
      %p137 = scmp.eq.s32.totalorder %s15, 1
      %p138 = scmp.ne.s32.totalorder %s133, %s135
      %p139 = scmp.eq.s32.totalorder %s15, 0
      %p140 = por %p138, %p139
      %p141 = scmp.ne.s32.totalorder %s133, %s135
      %p142 = scmp.eq.s32.totalorder %s20, 1
      %p143 = por %p141, %p142
      %p144 = scmp.ne.s32.totalorder %s135, %s136
      %p145 = scmp.eq.s32.totalorder %s20, 0
      %p146 = por %p144, %p145
      %p147 = scmp.ne.s32.totalorder %s135, %s136
      %p148 = scmp.eq.s32.totalorder %s21, 1
      %p149 = por %p147, %p148
      %p151 = scmp.ne.s32.totalorder %s136, %s150
      %p152 = scmp.eq.s32.totalorder %s21, 0
      %p153 = por %p151, %p152
      %s155 = sadd.s32 %s154, 1
      %p158 = scmp.eq.s32.totalorder %s15, 1
      %p159 = scmp.ne.s32.totalorder %s154, %s156
      %p160 = scmp.eq.s32.totalorder %s15, 0
      %p161 = por %p159, %p160
      %p162 = scmp.ne.s32.totalorder %s154, %s156
      %p163 = scmp.eq.s32.totalorder %s20, 1
      %p164 = por %p162, %p163
      %p165 = scmp.ne.s32.totalorder %s156, %s157
      %p166 = scmp.eq.s32.totalorder %s20, 0
      %p167 = por %p165, %p166
      %p168 = scmp.ne.s32.totalorder %s156, %s157
      %p169 = scmp.eq.s32.totalorder %s21, 1
      %p170 = por %p168, %p169
      %p172 = scmp.ne.s32.totalorder %s157, %s171
      %p173 = scmp.eq.s32.totalorder %s21, 0
      %p174 = por %p172, %p173
      %s175 = ssub.s32 %s15, %s22
      %p176 = scmp.eq.s32.totalorder %s175, 0
      %s178 = sadd.s32 %s177, 1
      %s179 = scalar_select %p176, %s177, %s178
      %p182 = pneg %p176
      %p183 = scmp.eq.s32.totalorder %s15, 1
      %p184 = por %p182, %p183
      %p185 = scmp.ne.s32.totalorder %s177, %s180
      %p186 = scmp.eq.s32.totalorder %s15, 0
      %p187 = por %p185, %p186
      %p188 = scmp.ne.s32.totalorder %s177, %s180
      %p189 = scmp.eq.s32.totalorder %s20, 1
      %p190 = por %p188, %p189
      %p191 = scmp.ne.s32.totalorder %s180, %s181
      %p192 = scmp.eq.s32.totalorder %s20, 0
      %p193 = por %p191, %p192
      %p194 = scmp.ne.s32.totalorder %s180, %s181
      %p195 = scmp.eq.s32.totalorder %s21, 1
      %p196 = por %p194, %p195
      %p198 = scmp.ne.s32.totalorder %s181, %s197
      %p199 = scmp.eq.s32.totalorder %s21, 0
      %p200 = por %p198, %p199
      %p201 = scmp.le.s32.totalorder 1, %s15
      %p202 = scmp.lt.s32.totalorder %s15, 3
      %p203 = pnand %p201, %p202
      %p204 = pneg %p203
      // Predicated region
      $region9: #{net_forward.1} parent=5 // pred_check
        _
      $region10: #{net_forward.1} parent=5 // pred_check_branch
        %206 = sbr.rel (%p203) target = $region12
      $region11: #{net_forward.1} parent=5 // pred_region
        %s207 = ssub.s32 %s15, 1
        // Predicated region
        $region13: #{net_forward.1} parent=11 // pred_check
          %p208 = pneg %p62
        $region14: #{net_forward.1} parent=11 // pred_check_branch
          %210 = sbr.rel (%p208) target = $region16
        $region15: #{net_forward.1} parent=11 // pred_region
          _
        $region16: #{net_forward.1} parent=11 // pred_fallthru
          _
        // Predicated region
        $region17: #{net_forward.1} parent=11 // pred_check
          %p211 = pneg %p83
        $region18: #{net_forward.1} parent=11 // pred_check_branch
          %213 = sbr.rel (%p211) target = $region20
        $region19: #{net_forward.1} parent=11 // pred_region
          _
        $region20: #{net_forward.1} parent=11 // pred_fallthru
          _
        // Predicated region
        $region21: #{net_forward.1} parent=11 // pred_check
          %p214 = pneg %p104
        $region22: #{net_forward.1} parent=11 // pred_check_branch
          %216 = sbr.rel (%p214) target = $region24
        $region23: #{net_forward.1} parent=11 // pred_region
          %s218 = ssub.s32 2048, 2048
          %219 = vsyncadd [#allocation3], %s218
          %s220 = sshll.u32 [#allocation2], 4
          %s221 = int_to_ptr.vmem [resolvable:$true] %s220
          %226 = dma.hbm_to_vmem [thread:$0]  %s3, 2048, %s221, [#allocation3], 128, 128, 8
        $region24: #{net_forward.1} parent=11 // pred_fallthru
          _
        // Predicated region
        $region25: #{net_forward.1} parent=11 // pred_check
          %p227 = pneg %p125
        $region26: #{net_forward.1} parent=11 // pred_check_branch
          %229 = sbr.rel (%p227) target = $region28
        $region27: #{net_forward.1} parent=11 // pred_region
          _
        $region28: #{net_forward.1} parent=11 // pred_fallthru
          _
        // Predicated region
        $region29: #{net_forward.1} parent=11 // pred_check
          %p230 = pneg %p146
        $region30: #{net_forward.1} parent=11 // pred_check_branch
          %232 = sbr.rel (%p230) target = $region32
        $region31: #{net_forward.1} parent=11 // pred_region
          %s234 = ssub.s32 2048, 2048
          %235 = vsyncadd [#allocation5], %s234
          %s236 = sshll.u32 [#allocation4], 4
          %s237 = int_to_ptr.vmem [resolvable:$true] %s236
          %242 = dma.hbm_to_vmem [thread:$0]  %s5, 2048, %s237, [#allocation5], 128, 128, 8
        $region32: #{net_forward.1} parent=11 // pred_fallthru
          _
        // Predicated region
        $region33: #{net_forward.1} parent=11 // pred_check
          %p243 = pneg %p167
        $region34: #{net_forward.1} parent=11 // pred_check_branch
          %245 = sbr.rel (%p243) target = $region36
        $region35: #{net_forward.1} parent=11 // pred_region
          _
        $region36: #{net_forward.1} parent=11 // pred_fallthru
          _
      $region12: #{net_forward.1} parent=5 // pred_fallthru
        _
      %p246 = scmp.lt.s32.totalorder %s15, 2
      // Predicated region
      $region37: #{net_forward.1} parent=5 // pred_check
        %p247 = pneg %p246
      $region38: #{net_forward.1} parent=5 // pred_check_branch
        %249 = sbr.rel (%p247) target = $region40
      $region39: #{net_forward.1} parent=5 // pred_region
        // Predicated region
        $region41: #{net_forward.1} parent=39 // pred_check
          %p250 = pneg %p35
        $region42: #{net_forward.1} parent=39 // pred_check_branch
          %252 = sbr.rel (%p250) target = $region44
        $region43: #{net_forward.1} parent=39 // pred_region
          %s253 = smul.u32 2, %s15
          %p254 = scmp.lt.s32.totalorder %s253, 3
          %s255 = scalar_select %p254, %s253, 3
          %s256 = smul.addr %s255, 8
          %s257 = scalar_lea.vmem %s0, %s256
          %s258 = smul.u32 2, %s15
        $region44: #{net_forward.1} parent=39 // pred_fallthru
          _
      $region40: #{net_forward.1} parent=5 // pred_fallthru
        _
      %p259 = scmp.le.s32.totalorder 1, %s15
      %p260 = scmp.lt.s32.totalorder %s15, 3
      %p261 = pnand %p259, %p260
      %p262 = pneg %p261
      // Predicated region
      $region45: #{net_forward.1} parent=5 // pred_check
        _
      $region46: #{net_forward.1} parent=5 // pred_check_branch
        %264 = sbr.rel (%p261) target = $region48
      $region47: #{net_forward.1} parent=5 // pred_region
        %s265 = ssub.s32 %s15, 1
        // Predicated region
        $region49: #{net_forward.1} parent=47 // pred_check
          %p266 = pneg %p104
        $region50: #{net_forward.1} parent=47 // pred_check_branch
          %268 = sbr.rel (%p266) target = $region52
        $region51: #{net_forward.1} parent=47 // pred_region
          %269 = dma.done [#allocation3], 2048
        $region52: #{net_forward.1} parent=47 // pred_fallthru
          _
        // Predicated region
        $region53: #{net_forward.1} parent=47 // pred_check
          %p270 = pneg %p146
        $region54: #{net_forward.1} parent=47 // pred_check_branch
          %272 = sbr.rel (%p270) target = $region56
        $region55: #{net_forward.1} parent=47 // pred_region
          %273 = dma.done [#allocation5], 2048
        $region56: #{net_forward.1} parent=47 // pred_fallthru
          _
        %s274 = smul.u32 2, %s20
        %p275 = scmp.lt.s32.totalorder %s274, 3
        %s276 = scalar_select %p275, %s274, 3
        %s277 = smul.addr %s276, 8
        %s278 = scalar_lea.vmem %s0, %s277
        %p279 = pneg %p41
        %p280 = pneg %p38
        %p281 = pneg %p62
        %p282 = pneg %p59
        %p283 = pneg %p83
        %p284 = pneg %p80
        %p285 = pneg %p104
        %p286 = pneg %p101
        %p287 = pneg %p125
        %p288 = pneg %p122
        %p289 = pneg %p146
        %p290 = pneg %p143
        %p291 = pneg %p167
        %p292 = pneg %p164
        %p293 = pneg %p193
        %p294 = pneg %p190
        %s295 = smul.u32 2, %s20
        %p296 = scmp.lt.s32.totalorder %s295, 3
        %s297 = scalar_select %p296, %s295, 3
        %s298 = smul.addr %s297, 8
        %s299 = scalar_lea.vmem %s7, %s298
        %s300 = smul.u32 2, %s20
        %p301 = scmp.lt.s32.totalorder %s300, 3
        %s302 = scalar_select %p301, %s300, 3
        %s303 = smul.addr %s302, 8
        %s304 = scalar_lea.vmem %s0, %s303
        %s305 = smul.u32 2, %s20
        %s306 = smul.u32 2, %s20
        %p307 = scmp.lt.s32.totalorder %s306, 3
        %s308 = scalar_select %p307, %s306, 3
        %s309 = smul.addr %s308, 8
        %s310 = scalar_lea.vmem %s7, %s309
        %s311 = smul.u32 2, %s20
        %v312 = vld [vmem:[%s304] sm:$0xff]
        %v313 = vld [vmem:[%s304 + $0x8] sm:$0xff]
        %v314 = vld [vmem:[%s1] sm:$0xff]
        %v315 = vld [vmem:[%s1 + $0x8] sm:$0xff]
        %v316 = vld [vmem:[%s2] sm:$0x1]
        %v318 = vlaneseq
        %v319 = vshrl.u32 %v318, 7
        %v320 = vsub.s32 0, %v319
        %v321 = vrot.slane %v316, %v320
        %vm323 = vcmask 130048
        %v325 = vsel %vm323, %v312, 0
        %v328 = vsel %vm323, %v313, 0
        %330 = vmatprep.subr.mxu0 0.0
        %331 = vmatpush1.msra.mxu0 %v314
        %332 = vmatprep.subr.mxu0 0.0
        %333 = vmatpush1.msra.mxu0 %v315
        %334 = vmatprep.subr.mxu0 0.0
        %335 = vmatpush1.msra.mxu0 0.0
        %336 = vmatprep.subr.mxu0 0.0
        %337 = vmatpush1.msra.mxu0 0.0
        %338 = vmatprep.subr.mxu0 0.0
        %339 = vmatpush1.msra.mxu0 0.0
        %340 = vmatprep.subr.mxu0 0.0
        %341 = vmatpush1.msra.mxu0 0.0
        %342 = vmatprep.subr.mxu0 0.0
        %343 = vmatpush1.msra.mxu0 0.0
        %344 = vmatprep.subr.mxu0 0.0
        %345 = vmatpush1.msra.mxu0 0.0
        %346 = vmatprep.subr.mxu0 0.0
        %347 = vmatpush1.msra.mxu0 0.0
        %348 = vmatprep.subr.mxu0 0.0
        %349 = vmatpush1.msra.mxu0 0.0
        %350 = vmatprep.subr.mxu0 0.0
        %351 = vmatpush1.msra.mxu0 0.0
        %352 = vmatprep.subr.mxu0 0.0
        %353 = vmatpush1.msra.mxu0 0.0
        %354 = vmatprep.subr.mxu0 0.0
        %355 = vmatpush1.msra.mxu0 0.0
        %356 = vmatprep.subr.mxu0 0.0
        %357 = vmatpush1.msra.mxu0 0.0
        %358 = vmatprep.subr.mxu0 0.0
        %359 = vmatpush1.msra.mxu0 0.0
        %360 = vmatprep.subr.mxu0 0.0
        %361 = vmatpush1.msra.mxu0 0.0
        %362 = vmatprep.subr.mxu0 0.0
        %363 = vmatpush1.msra.mxu0 0.0
        %364 = vmatprep.subr.mxu0 0.0
        %365 = vmatpush1.msra.mxu0 0.0
        %366 = vmatprep.subr.mxu0 0.0
        %367 = vmatpush1.msra.mxu0 0.0
        %368 = vmatprep.subr.mxu0 0.0
        %369 = vmatpush1.msra.mxu0 0.0
        %370 = vmatprep.subr.mxu0 0.0
        %371 = vmatpush1.msra.mxu0 0.0
        %372 = vmatprep.subr.mxu0 0.0
        %373 = vmatpush1.msra.mxu0 0.0
        %374 = vmatprep.subr.mxu0 0.0
        %375 = vmatpush1.msra.mxu0 0.0
        %376 = vmatprep.subr.mxu0 0.0
        %377 = vmatpush1.msra.mxu0 0.0
        %378 = vmatprep.subr.mxu0 0.0
        %379 = vmatpush1.msra.mxu0 0.0
        %380 = vmatprep.subr.mxu0 0.0
        %381 = vmatpush1.msra.mxu0 0.0
        %382 = vmatprep.subr.mxu0 0.0
        %383 = vmatpush1.msra.mxu0 0.0
        %384 = vmatprep.subr.mxu0 0.0
        %385 = vmatpush1.msra.mxu0 0.0
        %386 = vmatprep.subr.mxu0 0.0
        %387 = vmatpush1.msra.mxu0 0.0
        %388 = vmatprep.subr.mxu0 0.0
        %389 = vmatpush1.msra.mxu0 0.0
        %390 = vmatprep.subr.mxu0 0.0
        %391 = vmatpush1.msra.mxu0 0.0
        %392 = vmatprep.subr.mxu0 0.0
        %393 = vmatpush1.msra.mxu0 0.0
        %394 = vmatprep.mubr.f32.mxu0 0.0
        %395 = vmatmul.mubr.f32.gmra.mrb[0].mxu0 %v325
        %v396 = vpop.f32.mrb[0].mxu0
        %v397 = vadd.f32 %v321, %v396
        %v398 = vpop.f32.mrb[0].mxu0
        %399 = vmatprep.mubr.f32.mxu0 0.0
        %400 = vmatmul.mubr.f32.gmra.mrb[0].mxu0 %v328
        %v401 = vpop.f32.mrb[0].mxu0
        %v402 = vadd.f32 %v321, %v401
        %v403 = vpop.f32.mrb[0].mxu0
        %404 = vdwg.mxu0
        %v405 = vmul.f32 %v397, 0.5
        %v406 = vmul.f32 %v402, 0.5
        %v407 = vmul.f32 %v397, 0.70710677
        %v408 = vmul.f32 %v402, 0.70710677
        %v409 = verf.f32.pop %v407
        %v410 = verf.f32.pop %v408
        %v411 = vadd.f32 %v409, 1.0
        %v412 = vadd.f32 %v410, 1.0
        %v413 = vmul.f32 %v405, %v411
        %v414 = vmul.f32 %v406, %v412
        %v415 = vld [vmem:[#allocation2] sm:$0xff]
        %v416 = vld [vmem:[#allocation2 + $0x8] sm:$0xff]
        %v417 = vld [vmem:[#allocation2 + $0x10] sm:$0xff]
        %v418 = vld [vmem:[#allocation2 + $0x18] sm:$0xff]
        %v419 = vld [vmem:[#allocation2 + $0x20] sm:$0xff]
        %v420 = vld [vmem:[#allocation2 + $0x28] sm:$0xff]
        %v421 = vld [vmem:[#allocation2 + $0x30] sm:$0xff]
        %v422 = vld [vmem:[#allocation2 + $0x38] sm:$0xff]
        %v423 = vld [vmem:[#allocation2 + $0x40] sm:$0xff]
        %v424 = vld [vmem:[#allocation2 + $0x48] sm:$0xff]
        %v425 = vld [vmem:[#allocation2 + $0x50] sm:$0xff]
        %v426 = vld [vmem:[#allocation2 + $0x58] sm:$0xff]
        %v427 = vld [vmem:[#allocation2 + $0x60] sm:$0xff]
        %v428 = vld [vmem:[#allocation2 + $0x68] sm:$0xff]
        %v429 = vld [vmem:[#allocation2 + $0x70] sm:$0xff]
        %v430 = vld [vmem:[#allocation2 + $0x78] sm:$0xff]
        %v431 = vld [vmem:[%s4] sm:$0x1]
        %v433 = vlaneseq
        %v434 = vshrl.u32 %v433, 7
        %v435 = vsub.s32 0, %v434
        %v436 = vrot.slane %v431, %v435
        %438 = vmatprep.subr.mxu0 0.0
        %439 = vmatpush1.msra.mxu0 %v415
        %440 = vmatprep.subr.mxu0 0.0
        %441 = vmatpush1.msra.mxu0 %v416
        %442 = vmatprep.subr.mxu0 0.0
        %443 = vmatpush1.msra.mxu0 %v417
        %444 = vmatprep.subr.mxu0 0.0
        %445 = vmatpush1.msra.mxu0 %v418
        %446 = vmatprep.subr.mxu0 0.0
        %447 = vmatpush1.msra.mxu0 %v419
        %448 = vmatprep.subr.mxu0 0.0
        %449 = vmatpush1.msra.mxu0 %v420
        %450 = vmatprep.subr.mxu0 0.0
        %451 = vmatpush1.msra.mxu0 %v421
        %452 = vmatprep.subr.mxu0 0.0
        %453 = vmatpush1.msra.mxu0 %v422
        %454 = vmatprep.subr.mxu0 0.0
        %455 = vmatpush1.msra.mxu0 %v423
        %456 = vmatprep.subr.mxu0 0.0
        %457 = vmatpush1.msra.mxu0 %v424
        %458 = vmatprep.subr.mxu0 0.0
        %459 = vmatpush1.msra.mxu0 %v425
        %460 = vmatprep.subr.mxu0 0.0
        %461 = vmatpush1.msra.mxu0 %v426
        %462 = vmatprep.subr.mxu0 0.0
        %463 = vmatpush1.msra.mxu0 %v427
        %464 = vmatprep.subr.mxu0 0.0
        %465 = vmatpush1.msra.mxu0 %v428
        %466 = vmatprep.subr.mxu0 0.0
        %467 = vmatpush1.msra.mxu0 %v429
        %468 = vmatprep.subr.mxu0 0.0
        %469 = vmatpush1.msra.mxu0 %v430
        %470 = vmatprep.subr.mxu0 0.0
        %471 = vmatpush1.msra.mxu0 0.0
        %472 = vmatprep.subr.mxu0 0.0
        %473 = vmatpush1.msra.mxu0 0.0
        %474 = vmatprep.subr.mxu0 0.0
        %475 = vmatpush1.msra.mxu0 0.0
        %476 = vmatprep.subr.mxu0 0.0
        %477 = vmatpush1.msra.mxu0 0.0
        %478 = vmatprep.subr.mxu0 0.0
        %479 = vmatpush1.msra.mxu0 0.0
        %480 = vmatprep.subr.mxu0 0.0
        %481 = vmatpush1.msra.mxu0 0.0
        %482 = vmatprep.subr.mxu0 0.0
        %483 = vmatpush1.msra.mxu0 0.0
        %484 = vmatprep.subr.mxu0 0.0
        %485 = vmatpush1.msra.mxu0 0.0
        %486 = vmatprep.subr.mxu0 0.0
        %487 = vmatpush1.msra.mxu0 0.0
        %488 = vmatprep.subr.mxu0 0.0
        %489 = vmatpush1.msra.mxu0 0.0
        %490 = vmatprep.subr.mxu0 0.0
        %491 = vmatpush1.msra.mxu0 0.0
        %492 = vmatprep.subr.mxu0 0.0
        %493 = vmatpush1.msra.mxu0 0.0
        %494 = vmatprep.subr.mxu0 0.0
        %495 = vmatpush1.msra.mxu0 0.0
        %496 = vmatprep.subr.mxu0 0.0
        %497 = vmatpush1.msra.mxu0 0.0
        %498 = vmatprep.subr.mxu0 0.0
        %499 = vmatpush1.msra.mxu0 0.0
        %500 = vmatprep.subr.mxu0 0.0
        %501 = vmatpush1.msra.mxu0 0.0
        %502 = vmatprep.mubr.f32.mxu0 0.0
        %503 = vmatmul.mubr.f32.gmra.mrb[0].mxu0 %v413
        %v504 = vpop.f32.mrb[0].mxu0
        %v505 = vadd.f32 %v436, %v504
        %v506 = vpop.f32.mrb[0].mxu0
        %507 = vmatprep.mubr.f32.mxu0 0.0
        %508 = vmatmul.mubr.f32.gmra.mrb[0].mxu0 %v414
        %v509 = vpop.f32.mrb[0].mxu0
        %v510 = vadd.f32 %v436, %v509
        %v511 = vpop.f32.mrb[0].mxu0
        %512 = vdwg.mxu0
        %v513 = vmul.f32 %v505, 0.5
        %v514 = vmul.f32 %v510, 0.5
        %v515 = vmul.f32 %v505, 0.70710677
        %v516 = vmul.f32 %v510, 0.70710677
        %v517 = verf.f32.pop %v515
        %v518 = verf.f32.pop %v516
        %v519 = vadd.f32 %v517, 1.0
        %v520 = vadd.f32 %v518, 1.0
        %v521 = vmul.f32 %v513, %v519
        %v522 = vmul.f32 %v514, %v520
        %v523 = vld [vmem:[#allocation4] sm:$0xff]
        %v524 = vld [vmem:[#allocation4 + $0x8] sm:$0xff]
        %v525 = vld [vmem:[#allocation4 + $0x10] sm:$0xff]
        %v526 = vld [vmem:[#allocation4 + $0x18] sm:$0xff]
        %v527 = vld [vmem:[#allocation4 + $0x20] sm:$0xff]
        %v528 = vld [vmem:[#allocation4 + $0x28] sm:$0xff]
        %v529 = vld [vmem:[#allocation4 + $0x30] sm:$0xff]
        %v530 = vld [vmem:[#allocation4 + $0x38] sm:$0xff]
        %v531 = vld [vmem:[#allocation4 + $0x40] sm:$0xff]
        %v532 = vld [vmem:[#allocation4 + $0x48] sm:$0xff]
        %v533 = vld [vmem:[#allocation4 + $0x50] sm:$0xff]
        %v534 = vld [vmem:[#allocation4 + $0x58] sm:$0xff]
        %v535 = vld [vmem:[#allocation4 + $0x60] sm:$0xff]
        %v536 = vld [vmem:[#allocation4 + $0x68] sm:$0xff]
        %v537 = vld [vmem:[#allocation4 + $0x70] sm:$0xff]
        %v538 = vld [vmem:[#allocation4 + $0x78] sm:$0xff]
        %v539 = vld [vmem:[%s6] sm:$0x1]
        %v541 = vlaneseq
        %v542 = vshrl.u32 %v541, 7
        %v543 = vsub.s32 0, %v542
        %v544 = vrot.slane %v539, %v543
        %546 = vmatprep.subr.mxu0 0.0
        %547 = vmatpush1.msra.mxu0 %v523
        %548 = vmatprep.subr.mxu0 0.0
        %549 = vmatpush1.msra.mxu0 %v524
        %550 = vmatprep.subr.mxu0 0.0
        %551 = vmatpush1.msra.mxu0 %v525
        %552 = vmatprep.subr.mxu0 0.0
        %553 = vmatpush1.msra.mxu0 %v526
        %554 = vmatprep.subr.mxu0 0.0
        %555 = vmatpush1.msra.mxu0 %v527
        %556 = vmatprep.subr.mxu0 0.0
        %557 = vmatpush1.msra.mxu0 %v528
        %558 = vmatprep.subr.mxu0 0.0
        %559 = vmatpush1.msra.mxu0 %v529
        %560 = vmatprep.subr.mxu0 0.0
        %561 = vmatpush1.msra.mxu0 %v530
        %562 = vmatprep.subr.mxu0 0.0
        %563 = vmatpush1.msra.mxu0 %v531
        %564 = vmatprep.subr.mxu0 0.0
        %565 = vmatpush1.msra.mxu0 %v532
        %566 = vmatprep.subr.mxu0 0.0
        %567 = vmatpush1.msra.mxu0 %v533
        %568 = vmatprep.subr.mxu0 0.0
        %569 = vmatpush1.msra.mxu0 %v534
        %570 = vmatprep.subr.mxu0 0.0
        %571 = vmatpush1.msra.mxu0 %v535
        %572 = vmatprep.subr.mxu0 0.0
        %573 = vmatpush1.msra.mxu0 %v536
        %574 = vmatprep.subr.mxu0 0.0
        %575 = vmatpush1.msra.mxu0 %v537
        %576 = vmatprep.subr.mxu0 0.0
        %577 = vmatpush1.msra.mxu0 %v538
        %578 = vmatprep.subr.mxu0 0.0
        %579 = vmatpush1.msra.mxu0 0.0
        %580 = vmatprep.subr.mxu0 0.0
        %581 = vmatpush1.msra.mxu0 0.0
        %582 = vmatprep.subr.mxu0 0.0
        %583 = vmatpush1.msra.mxu0 0.0
        %584 = vmatprep.subr.mxu0 0.0
        %585 = vmatpush1.msra.mxu0 0.0
        %586 = vmatprep.subr.mxu0 0.0
        %587 = vmatpush1.msra.mxu0 0.0
        %588 = vmatprep.subr.mxu0 0.0
        %589 = vmatpush1.msra.mxu0 0.0
        %590 = vmatprep.subr.mxu0 0.0
        %591 = vmatpush1.msra.mxu0 0.0
        %592 = vmatprep.subr.mxu0 0.0
        %593 = vmatpush1.msra.mxu0 0.0
        %594 = vmatprep.subr.mxu0 0.0
        %595 = vmatpush1.msra.mxu0 0.0
        %596 = vmatprep.subr.mxu0 0.0
        %597 = vmatpush1.msra.mxu0 0.0
        %598 = vmatprep.subr.mxu0 0.0
        %599 = vmatpush1.msra.mxu0 0.0
        %600 = vmatprep.subr.mxu0 0.0
        %601 = vmatpush1.msra.mxu0 0.0
        %602 = vmatprep.subr.mxu0 0.0
        %603 = vmatpush1.msra.mxu0 0.0
        %604 = vmatprep.subr.mxu0 0.0
        %605 = vmatpush1.msra.mxu0 0.0
        %606 = vmatprep.subr.mxu0 0.0
        %607 = vmatpush1.msra.mxu0 0.0
        %608 = vmatprep.subr.mxu0 0.0
        %609 = vmatpush1.msra.mxu0 0.0
        %610 = vmatprep.mubr.f32.mxu0 0.0
        %611 = vmatmul.mubr.f32.gmra.mrb[0].mxu0 %v521
        %v612 = vpop.f32.mrb[0].mxu0
        %v613 = vadd.f32 %v544, %v612
        %v614 = vpop.f32.mrb[0].mxu0
        %615 = vmatprep.mubr.f32.mxu0 0.0
        %616 = vmatmul.mubr.f32.gmra.mrb[0].mxu0 %v522
        %v617 = vpop.f32.mrb[0].mxu0
        %v618 = vadd.f32 %v544, %v617
        %v619 = vpop.f32.mrb[0].mxu0
        %620 = vdwg.mxu0
        %621 = vst [vmem:[%s310] sm:$0xff] %v613
        %622 = vst [vmem:[%s310 + $0x8] sm:$0xff] %v618
        %s623 = smul.u32 2, %s20
        %p624 = scmp.lt.s32.totalorder %s623, 3
        %s625 = scalar_select %p624, %s623, 3
        %s626 = smul.addr %s625, 8
        %s627 = scalar_lea.vmem %s7, %s626
        // Predicated region
        $region57: #{net_forward.1} parent=47 // pred_check
          %p628 = pneg %p190
        $region58: #{net_forward.1} parent=47 // pred_check_branch
          %630 = sbr.rel (%p628) target = $region60
        $region59: #{net_forward.1} parent=47 // pred_region
          %s631 = smul.u32 2, %s20
        $region60: #{net_forward.1} parent=47 // pred_fallthru
          _
      $region48: #{net_forward.1} parent=5 // pred_fallthru
        _
      %p632 = scmp.le.s32.totalorder 2, %s15
      // Predicated region
      $region61: #{net_forward.1} parent=5 // pred_check
        %p633 = pneg %p632
      $region62: #{net_forward.1} parent=5 // pred_check_branch
        %635 = sbr.rel (%p633) target = $region64
      $region63: #{net_forward.1} parent=5 // pred_region
        %s636 = ssub.s32 %s15, 2
        // Predicated region
        $region65: #{net_forward.1} parent=63 // pred_check
          %p637 = pneg %p196
        $region66: #{net_forward.1} parent=63 // pred_check_branch
          %639 = sbr.rel (%p637) target = $region68
        $region67: #{net_forward.1} parent=63 // pred_region
          %s640 = smul.u32 2, %s21
          %p641 = scmp.lt.s32.totalorder %s640, 3
          %s642 = scalar_select %p641, %s640, 3
          %s643 = smul.addr %s642, 8
          %s644 = scalar_lea.vmem %s7, %s643
        $region68: #{net_forward.1} parent=63 // pred_fallthru
          _
      $region64: #{net_forward.1} parent=5 // pred_fallthru
        _
    $region6: #{net_forward.1} parent=1 // loop_footer
      %s19 = sadd.s32 1, %s15
    $region7: #{net_forward.1} parent=1 // loop_footer_branch
      %14 = sbr.rel target = $region3
    $region8: #{net_forward.1} parent=1 // loop_exit
      _
    %645 = vsyncpa [#allocation3], 1
    %s646 = scalar_lea.sflag [#allocation3], 1
    %647 = vsyncpa %s646, 1
    %648 = vsyncpa [#allocation5], 1

</llo_original>
